<compile_context>
chip_gen: v7x
topology: tpu7x:2x2x1
jax: 0.10.0
libtpu: 0.0.40
codegen_flags: <defaults>
</compile_context>

<pallas_src>
import math
from functools import partial

import numpy as np
import jax
import jax.numpy as jnp
from jax import lax
from jax.experimental import pallas as pl
from jax.experimental.pallas import tpu as pltpu


_TAPS = [(dy, dx) for dy in (-1, 0, 1) for dx in (-1, 0, 1)]   # (ky, kx) row-major
_CENTER = _TAPS.index((0, 0))


def _gelu(x, approximate=False):
    if approximate:
        # tanh form -> EUP slot (overlaps VPU/MXU work)
        return jax.nn.gelu(x, approximate=True)
    # exact (erf) GELU, matching torch.nn.functional.gelu default
    return 0.5 * x * (1.0 + lax.erf(x * (1.0 / math.sqrt(2.0))))


def _border_masks(H, W, Bt, dtype):
    """(9, Bt*H*W) {0,1} masks zeroing the 'SAME'-padding taps (and any
    cross-image leakage of the lane rolls).  Precomputed: loop-invariant."""
    N = Bt * H * W
    lane = np.arange(N)
    col = lane % W
    row = (lane // W) % H                      # row within its own image
    masks = np.ones((9, N), np.float32)
    for idx, (dy, dx) in enumerate(_TAPS):
        valid = np.ones(N, bool)
        if dx == -1:
            valid &= col >= 1
        if dx == 1:
            valid &= col < W - 1
        if dy == -1:
            valid &= row >= 1
        if dy == 1:
            valid &= row < H - 1
        masks[idx] = valid
    return jnp.asarray(masks, dtype)


def _make_block_kernel(H, W, N, Cin, Cmid, Cout, Cb, residual, compute_dtype,
                       approx_gelu):
    gelu = partial(_gelu, approximate=approx_gelu)
    # Materialized im2col only while the 9*Cmid contraction is tiny; at real
    # VDVAE widths accumulate tap-by-tap so only one (Cmid, N) tap is live
    # (keeps the working set inside v7x's 64 MiB VMEM).
    use_im2col = (9 * Cmid) < 128

    def kernel(x_ref, w1_ref, w2_ref, w3_ref, w4_ref, b_ref, m_ref, out_ref):
        x = x_ref[...]                                   # (Cin, N), f32

        # biases: one column each, packed at 8-aligned sublane offsets
        b1 = b_ref[0 * Cb:0 * Cb + Cmid, :]
        b2 = b_ref[1 * Cb:1 * Cb + Cmid, :]
        b3 = b_ref[2 * Cb:2 * Cb + Cmid, :]
        b4 = b_ref[3 * Cb:3 * Cb + Cout, :]

        def conv1x1(a, w_ref, b):
            g = gelu(a).astype(compute_dtype)
            return jnp.dot(w_ref[...], g, preferred_element_type=jnp.float32) + b

        def tap(g, idx):
            dy, dx = _TAPS[idx]
            s = dy * W + dx                              # want t[p] = g[p + s]
            t = pltpu.roll(g, shift=(-s) % N, axis=1) if s != 0 else g
            if idx != _CENTER:                           # zero SAME-pad / wrap lanes
                t = t * m_ref[idx:idx + 1, :]
            return t

        def conv3x3(a, w_ref, b):
            # cast BEFORE roll/mask: halves XLU + select traffic on the bf16 path
            g = gelu(a).astype(compute_dtype)
            if use_im2col:
                patches = jnp.concatenate([tap(g, i) for i in range(9)], axis=0)
                return jnp.dot(w_ref[...], patches,
                               preferred_element_type=jnp.float32) + b
            acc = None
            for i in range(9):                           # one tap live at a time
                p = jnp.dot(w_ref[:, i * Cmid:(i + 1) * Cmid], tap(g, i),
                            preferred_element_type=jnp.float32)
                acc = p if acc is None else acc + p
            return acc + b

        h = conv1x1(x, w1_ref, b1)                       # c1: (Cmid, N)
        h = conv3x3(h, w2_ref, b2)                       # c2
        h = conv3x3(h, w3_ref, b3)                       # c3
        y = conv1x1(h, w4_ref, b4)                       # c4: (Cout, N)

        if residual:
            y = y + x
        out_ref[...] = y.astype(out_ref.dtype)           # lane-dense (Cout, N) store

    return kernel


def _vmem_limit_bytes():
    try:
        phys = pltpu.get_tpu_info().vmem_capacity_bytes
    except Exception:
        phys = 128 * 1024 * 1024
    # ~3/4 of physical, capped: ~48 MiB on v7x (64 MiB/TC), 96 MiB on v5e/v6e.
    return int(min(96 * 1024 * 1024, phys * 3 // 4))


def _pick_batch_tile(B, HW, target_lanes=2048):
    bt = max(1, min(B, target_lanes // max(HW, 1)))
    while B % bt:                                        # largest divisor of B <= bt
        bt -= 1
    if bt < B and (bt * HW) % 128:                       # keep lane blocks 128-aligned
        bt = B
    return bt


def block_forward(x_nchw, params, *, residual=False, down_rate=None,
                  compute_dtype=jnp.bfloat16, approx_gelu=True, out_dtype=None):
    """Forward of `Block` (use_3x3=True).  x_nchw: (B, Cin, H, W) float32.

    Defaults are the performance path (bf16 MXU operands with f32 accumulation,
    tanh GELU).  Pass compute_dtype=jnp.float32, approx_gelu=False for
    torch-exact numerics.  `out_dtype` can be jnp.bfloat16 to halve writeback
    traffic when downstream consumers tolerate it.
    """
    w1, b1, w2, b2, w3, b3, w4, b4 = params
    B, Cin, H, W = x_nchw.shape
    HW = H * W
    Cmid = w1.shape[1]
    Cout = w4.shape[1]
    if residual and Cin != Cout:
        raise ValueError(f"residual Block needs Cin == Cout, got {Cin} vs {Cout}")
    out_dtype = x_nchw.dtype if out_dtype is None else out_dtype

    Bt = _pick_batch_tile(B, HW)
    n_tiles = B // Bt
    N = Bt * HW

    # Repack: (B, Cin, H, W) -> (Cin, B*HW); batch folded onto the lane axis.
    x = jnp.transpose(x_nchw, (1, 0, 2, 3)).reshape(Cin, B * HW)

    w1k = jnp.transpose(w1).astype(compute_dtype)                          # (Cmid, Cin)
    w2k = jnp.transpose(w2.reshape(9 * Cmid, Cmid)).astype(compute_dtype)  # (Cmid, 9*Cmid)
    w3k = jnp.transpose(w3.reshape(9 * Cmid, Cmid)).astype(compute_dtype)
    w4k = jnp.transpose(w4).astype(compute_dtype)                          # (Cout, Cmid)

    # Four biases packed into one small VMEM tile (one DMA descriptor).
    Cb = ((max(Cmid, Cout) + 7) // 8) * 8
    bp = jnp.zeros((4 * Cb, 1), jnp.float32)
    bp = bp.at[0 * Cb:0 * Cb + Cmid, 0].set(b1.reshape(-1))
    bp = bp.at[1 * Cb:1 * Cb + Cmid, 0].set(b2.reshape(-1))
    bp = bp.at[2 * Cb:2 * Cb + Cmid, 0].set(b3.reshape(-1))
    bp = bp.at[3 * Cb:3 * Cb + Cout, 0].set(b4.reshape(-1))

    masks = _border_masks(H, W, Bt, compute_dtype)                         # (9, N)

    kernel = _make_block_kernel(H, W, N, Cin, Cmid, Cout, Cb, residual,
                                compute_dtype, approx_gelu)

    def full(arr):
        return pl.BlockSpec(arr.shape, lambda bt, _nd=arr.ndim: (0,) * _nd)

    # Only CORE_PARALLEL actually splits a grid axis across v7x's 2 TensorCores;
    # with a single batch tile there is nothing to split.
    dim_sem = (pltpu.CORE_PARALLEL,) if n_tiles >= 2 else ("arbitrary",)

    out = pl.pallas_call(
        kernel,
        out_shape=jax.ShapeDtypeStruct((Cout, B * HW), out_dtype),
        grid_spec=pltpu.PrefetchScalarGridSpec(
            num_scalar_prefetch=0,
            grid=(n_tiles,),
            in_specs=[pl.BlockSpec((Cin, N), lambda bt: (0, bt)),
                      full(w1k), full(w2k), full(w3k), full(w4k),
                      full(bp), full(masks)],
            out_specs=pl.BlockSpec((Cout, N), lambda bt: (0, bt)),
        ),
        compiler_params=pltpu.CompilerParams(
            dimension_semantics=dim_sem,
            vmem_limit_bytes=_vmem_limit_bytes(),
        ),
    )(x, w1k, w2k, w3k, w4k, bp, masks)

    out = jnp.transpose(out.reshape(Cout, B, H, W), (1, 0, 2, 3))
    if down_rate is not None:
        # TODO(synk): fold avg_pool2d into the kernel epilogue; plain-JAX glue
        # here since it is not the hot path.
        d = down_rate
        out = out.reshape(B, Cout, H // d, d, W // d, d).mean(axis=(3, 5))
    return out


def _reference(x_nchw, params, *, residual=False, down_rate=None):
    """Pure-JAX reference using lax.conv (for correctness check only)."""
    w1, b1, w2, b2, w3, b3, w4, b4 = params
    x = jnp.transpose(x_nchw, (0, 2, 3, 1))

    def conv(h, w, b):
        return lax.conv_general_dilated(
            h, w, (1, 1), 'SAME',
            dimension_numbers=('NHWC', 'HWIO', 'NHWC')) + b.reshape(-1)

    h = conv(_gelu(x), w1.reshape(1, 1, *w1.shape), b1)
    h = conv(_gelu(h), w2, b2)
    h = conv(_gelu(h), w3, b3)
    h = conv(_gelu(h), w4.reshape(1, 1, *w4.shape), b4)
    out = x + h if residual else h
    if down_rate is not None:
        d = down_rate
        B, H, W, C = out.shape
        out = out.reshape(B, H // d, d, W // d, d, C).mean(axis=(2, 4))
    return jnp.transpose(out, (0, 3, 1, 2))


if __name__ == "__main__":
    key = jax.random.PRNGKey(0)
    B, Cin, H, W = 2, 4, 16, 16
    Cmid, Cout = 8, 4          # in_width=4, middle_width=8, out_width=4
    residual = True            # Block(..., residual=True), down_rate=None

    ks = jax.random.split(key, 9)
    s = 0.1
    # weights stored as (kh, kw, in, out) / (in, out); biases as (1, out)
    w1 = jax.random.normal(ks[0], (Cin, Cmid), jnp.float32) * s
    b1 = jax.random.normal(ks[1], (1, Cmid), jnp.float32) * s
    w2 = jax.random.normal(ks[2], (3, 3, Cmid, Cmid), jnp.float32) * s
    b2 = jax.random.normal(ks[3], (1, Cmid), jnp.float32) * s
    w3 = jax.random.normal(ks[4], (3, 3, Cmid, Cmid), jnp.float32) * s
    b3 = jax.random.normal(ks[5], (1, Cmid), jnp.float32) * s
    w4 = jax.random.normal(ks[6], (Cmid, Cout), jnp.float32) * s   # zero_last=False
    b4 = jax.random.normal(ks[7], (1, Cout), jnp.float32) * s
    x = jax.random.normal(ks[8], (B, Cin, H, W), jnp.float32)

    params = (w1, b1, w2, b2, w3, b3, w4, b4)
    ref = _reference(x, params, residual=residual, down_rate=None)

    # Torch-exact mode: f32 MXU operands + erf GELU.
    out_exact = block_forward(x, params, residual=residual, down_rate=None,
                              compute_dtype=jnp.float32, approx_gelu=False)
    out_exact = jax.block_until_ready(out_exact)
    assert out_exact.shape == (B, Cout, H, W), out_exact.shape
    assert jnp.allclose(out_exact, ref, atol=1e-4, rtol=1e-4), \
        float(jnp.max(jnp.abs(out_exact - ref)))

    # Performance default: bf16 MXU operands (f32 accumulation) + tanh GELU.
    out_fast = jax.block_until_ready(
        block_forward(x, params, residual=residual, down_rate=None))
    assert jnp.allclose(out_fast, ref, atol=5e-2, rtol=5e-2), \
        float(jnp.max(jnp.abs(out_fast - ref)))

    # down_rate (avg_pool2d) glue sanity check.
    ref_dr = _reference(x, params, residual=residual, down_rate=2)
    out_dr = jax.block_until_ready(
        block_forward(x, params, residual=residual, down_rate=2,
                      compute_dtype=jnp.float32, approx_gelu=False))
    assert jnp.allclose(out_dr, ref_dr, atol=1e-4, rtol=1e-4), \
        float(jnp.max(jnp.abs(out_dr - ref_dr)))

    print("KERNEL_OK")
</pallas_src>

<mosaic_0001>
module attributes {stable_mosaic.version = 11 : i64} {
  func.func @kernel(%arg0: i32, %arg1: memref<4x512xf32, #tpu.memory_space<vmem>>, %arg2: memref<8x4xf32, #tpu.memory_space<vmem>>, %arg3: memref<8x72xf32, #tpu.memory_space<vmem>>, %arg4: memref<8x72xf32, #tpu.memory_space<vmem>>, %arg5: memref<4x8xf32, #tpu.memory_space<vmem>>, %arg6: memref<32x1xf32, #tpu.memory_space<vmem>>, %arg7: memref<9x512xf32, #tpu.memory_space<vmem>>, %arg8: memref<4x512xf32, #tpu.memory_space<vmem>>) attributes {dimension_semantics = [#tpu.dimension_semantics<arbitrary>], iteration_bounds = array<i64: 1>, scalar_prefetch = 0 : i64, scratch_operands = 0 : i64, tpu.core_type = #tpu.core_type<tc>, window_params = [{transform_indices = @transform_0, window_bounds = array<i64: 4, 512>}, {pipeline_mode = #tpu.pipeline_mode<synchronous>, transform_indices = @transform_1, window_bounds = array<i64: 8, 4>}, {pipeline_mode = #tpu.pipeline_mode<synchronous>, transform_indices = @transform_2, window_bounds = array<i64: 8, 72>}, {pipeline_mode = #tpu.pipeline_mode<synchronous>, transform_indices = @transform_3, window_bounds = array<i64: 8, 72>}, {pipeline_mode = #tpu.pipeline_mode<synchronous>, transform_indices = @transform_4, window_bounds = array<i64: 4, 8>}, {pipeline_mode = #tpu.pipeline_mode<synchronous>, transform_indices = @transform_5, window_bounds = array<i64: 32, 1>}, {pipeline_mode = #tpu.pipeline_mode<synchronous>, transform_indices = @transform_6, window_bounds = array<i64: 9, 512>}, {transform_indices = @transform_7, window_bounds = array<i64: 4, 512>}]} {
    %c0 = arith.constant 0 : index
    %c0_0 = arith.constant 0 : index
    %0 = vector.load %arg1[%c0, %c0_0] : memref<4x512xf32, #tpu.memory_space<vmem>>, vector<4x512xf32>
    %c0_1 = arith.constant 0 : index
    %c0_2 = arith.constant 0 : index
    %1 = vector.load %arg6[%c0_1, %c0_2] : memref<32x1xf32, #tpu.memory_space<vmem>>, vector<8x1xf32>
    %c8 = arith.constant 8 : index
    %c0_3 = arith.constant 0 : index
    %2 = vector.load %arg6[%c8, %c0_3] : memref<32x1xf32, #tpu.memory_space<vmem>>, vector<8x1xf32>
    %c16 = arith.constant 16 : index
    %c0_4 = arith.constant 0 : index
    %3 = vector.load %arg6[%c16, %c0_4] : memref<32x1xf32, #tpu.memory_space<vmem>>, vector<8x1xf32>
    %c24 = arith.constant 24 : index
    %c0_5 = arith.constant 0 : index
    %4 = vector.load %arg6[%c24, %c0_5] : memref<32x1xf32, #tpu.memory_space<vmem>>, vector<4x1xf32>
    %cst = arith.constant 5.000000e-01 : f32
    %5 = vector.broadcast %cst : f32 to vector<4x512xf32>
    %6 = arith.mulf %5, %0 : vector<4x512xf32>
    %cst_6 = arith.constant 0.707106769 : f32
    %7 = vector.broadcast %cst_6 : f32 to vector<4x512xf32>
    %8 = arith.mulf %0, %7 : vector<4x512xf32>
    %9 = math.erf %8 : vector<4x512xf32>
    %cst_7 = arith.constant 1.000000e+00 : f32
    %10 = vector.broadcast %cst_7 : f32 to vector<4x512xf32>
    %11 = arith.addf %10, %9 : vector<4x512xf32>
    %12 = arith.mulf %6, %11 : vector<4x512xf32>
    %c0_8 = arith.constant 0 : index
    %c0_9 = arith.constant 0 : index
    %13 = vector.load %arg2[%c0_8, %c0_9] : memref<8x4xf32, #tpu.memory_space<vmem>>, vector<8x4xf32>
    %cst_10 = arith.constant dense<0.000000e+00> : vector<8x512xf32>
    %14 = tpu.matmul %13, %12, %cst_10 {dimension_numbers = #tpu.dot_dimension_numbers<[1], [0], [0], [1], [0, 0, 1, 1], [], []>} : vector<8x4xf32>, vector<4x512xf32>, vector<8x512xf32> -> vector<8x512xf32>
    %15 = vector.broadcast %1 : vector<8x1xf32> to vector<8x512xf32>
    %16 = arith.addf %14, %15 : vector<8x512xf32>
    %cst_11 = arith.constant 5.000000e-01 : f32
    %17 = vector.broadcast %cst_11 : f32 to vector<8x512xf32>
    %18 = arith.mulf %17, %16 : vector<8x512xf32>
    %cst_12 = arith.constant 0.707106769 : f32
    %19 = vector.broadcast %cst_12 : f32 to vector<8x512xf32>
    %20 = arith.mulf %16, %19 : vector<8x512xf32>
    %21 = math.erf %20 : vector<8x512xf32>
    %cst_13 = arith.constant 1.000000e+00 : f32
    %22 = vector.broadcast %cst_13 : f32 to vector<8x512xf32>
    %23 = arith.addf %22, %21 : vector<8x512xf32>
    %24 = arith.mulf %18, %23 : vector<8x512xf32>
    %c17_i32 = arith.constant 17 : i32
    %25 = tpu.dynamic_rotate %24 by %c17_i32 dim 1 : vector<8x512xf32>, i32 -> vector<8x512xf32>
    %c0_14 = arith.constant 0 : index
    %c0_15 = arith.constant 0 : index
    %26 = vector.load %arg7[%c0_14, %c0_15] : memref<9x512xf32, #tpu.memory_space<vmem>>, vector<1x512xf32>
    %27 = vector.broadcast %26 : vector<1x512xf32> to vector<8x512xf32>
    %28 = arith.mulf %25, %27 : vector<8x512xf32>
    %c16_i32 = arith.constant 16 : i32
    %29 = tpu.dynamic_rotate %24 by %c16_i32 dim 1 : vector<8x512xf32>, i32 -> vector<8x512xf32>
    %c1 = arith.constant 1 : index
    %c0_16 = arith.constant 0 : index
    %30 = vector.load %arg7[%c1, %c0_16] : memref<9x512xf32, #tpu.memory_space<vmem>>, vector<1x512xf32>
    %31 = vector.broadcast %30 : vector<1x512xf32> to vector<8x512xf32>
    %32 = arith.mulf %29, %31 : vector<8x512xf32>
    %c15_i32 = arith.constant 15 : i32
    %33 = tpu.dynamic_rotate %24 by %c15_i32 dim 1 : vector<8x512xf32>, i32 -> vector<8x512xf32>
    %c2 = arith.constant 2 : index
    %c0_17 = arith.constant 0 : index
    %34 = vector.load %arg7[%c2, %c0_17] : memref<9x512xf32, #tpu.memory_space<vmem>>, vector<1x512xf32>
    %35 = vector.broadcast %34 : vector<1x512xf32> to vector<8x512xf32>
    %36 = arith.mulf %33, %35 : vector<8x512xf32>
    %c1_i32 = arith.constant 1 : i32
    %37 = tpu.dynamic_rotate %24 by %c1_i32 dim 1 : vector<8x512xf32>, i32 -> vector<8x512xf32>
    %c3 = arith.constant 3 : index
    %c0_18 = arith.constant 0 : index
    %38 = vector.load %arg7[%c3, %c0_18] : memref<9x512xf32, #tpu.memory_space<vmem>>, vector<1x512xf32>
    %39 = vector.broadcast %38 : vector<1x512xf32> to vector<8x512xf32>
    %40 = arith.mulf %37, %39 : vector<8x512xf32>
    %c511_i32 = arith.constant 511 : i32
    %41 = tpu.dynamic_rotate %24 by %c511_i32 dim 1 : vector<8x512xf32>, i32 -> vector<8x512xf32>
    %c5 = arith.constant 5 : index
    %c0_19 = arith.constant 0 : index
    %42 = vector.load %arg7[%c5, %c0_19] : memref<9x512xf32, #tpu.memory_space<vmem>>, vector<1x512xf32>
    %43 = vector.broadcast %42 : vector<1x512xf32> to vector<8x512xf32>
    %44 = arith.mulf %41, %43 : vector<8x512xf32>
    %c497_i32 = arith.constant 497 : i32
    %45 = tpu.dynamic_rotate %24 by %c497_i32 dim 1 : vector<8x512xf32>, i32 -> vector<8x512xf32>
    %c6 = arith.constant 6 : index
    %c0_20 = arith.constant 0 : index
    %46 = vector.load %arg7[%c6, %c0_20] : memref<9x512xf32, #tpu.memory_space<vmem>>, vector<1x512xf32>
    %47 = vector.broadcast %46 : vector<1x512xf32> to vector<8x512xf32>
    %48 = arith.mulf %45, %47 : vector<8x512xf32>
    %c496_i32 = arith.constant 496 : i32
    %49 = tpu.dynamic_rotate %24 by %c496_i32 dim 1 : vector<8x512xf32>, i32 -> vector<8x512xf32>
    %c7 = arith.constant 7 : index
    %c0_21 = arith.constant 0 : index
    %50 = vector.load %arg7[%c7, %c0_21] : memref<9x512xf32, #tpu.memory_space<vmem>>, vector<1x512xf32>
    %51 = vector.broadcast %50 : vector<1x512xf32> to vector<8x512xf32>
    %52 = arith.mulf %49, %51 : vector<8x512xf32>
    %c495_i32 = arith.constant 495 : i32
    %53 = tpu.dynamic_rotate %24 by %c495_i32 dim 1 : vector<8x512xf32>, i32 -> vector<8x512xf32>
    %c8_22 = arith.constant 8 : index
    %c0_23 = arith.constant 0 : index
    %54 = vector.load %arg7[%c8_22, %c0_23] : memref<9x512xf32, #tpu.memory_space<vmem>>, vector<1x512xf32>
    %55 = vector.broadcast %54 : vector<1x512xf32> to vector<8x512xf32>
    %56 = arith.mulf %53, %55 : vector<8x512xf32>
    %57 = tpu.concatenate %28, %32, %36, %40, %24, %44, %48, %52, %56 in 0 : vector<8x512xf32>, vector<8x512xf32>, vector<8x512xf32>, vector<8x512xf32>, vector<8x512xf32>, vector<8x512xf32>, vector<8x512xf32>, vector<8x512xf32>, vector<8x512xf32> -> vector<72x512xf32>
    %c0_24 = arith.constant 0 : index
    %c0_25 = arith.constant 0 : index
    %58 = vector.load %arg3[%c0_24, %c0_25] : memref<8x72xf32, #tpu.memory_space<vmem>>, vector<8x72xf32>
    %cst_26 = arith.constant dense<0.000000e+00> : vector<8x512xf32>
    %59 = tpu.matmul %58, %57, %cst_26 {dimension_numbers = #tpu.dot_dimension_numbers<[1], [0], [0], [1], [0, 0, 1, 1], [], []>} : vector<8x72xf32>, vector<72x512xf32>, vector<8x512xf32> -> vector<8x512xf32>
    %60 = vector.broadcast %2 : vector<8x1xf32> to vector<8x512xf32>
    %61 = arith.addf %59, %60 : vector<8x512xf32>
    %cst_27 = arith.constant 5.000000e-01 : f32
    %62 = vector.broadcast %cst_27 : f32 to vector<8x512xf32>
    %63 = arith.mulf %62, %61 : vector<8x512xf32>
    %cst_28 = arith.constant 0.707106769 : f32
    %64 = vector.broadcast %cst_28 : f32 to vector<8x512xf32>
    %65 = arith.mulf %61, %64 : vector<8x512xf32>
    %66 = math.erf %65 : vector<8x512xf32>
    %cst_29 = arith.constant 1.000000e+00 : f32
    %67 = vector.broadcast %cst_29 : f32 to vector<8x512xf32>
    %68 = arith.addf %67, %66 : vector<8x512xf32>
    %69 = arith.mulf %63, %68 : vector<8x512xf32>
    %c17_i32_30 = arith.constant 17 : i32
    %70 = tpu.dynamic_rotate %69 by %c17_i32_30 dim 1 : vector<8x512xf32>, i32 -> vector<8x512xf32>
    %c0_31 = arith.constant 0 : index
    %c0_32 = arith.constant 0 : index
    %71 = vector.load %arg7[%c0_31, %c0_32] : memref<9x512xf32, #tpu.memory_space<vmem>>, vector<1x512xf32>
    %72 = vector.broadcast %71 : vector<1x512xf32> to vector<8x512xf32>
    %73 = arith.mulf %70, %72 : vector<8x512xf32>
    %c16_i32_33 = arith.constant 16 : i32
    %74 = tpu.dynamic_rotate %69 by %c16_i32_33 dim 1 : vector<8x512xf32>, i32 -> vector<8x512xf32>
    %c1_34 = arith.constant 1 : index
    %c0_35 = arith.constant 0 : index
    %75 = vector.load %arg7[%c1_34, %c0_35] : memref<9x512xf32, #tpu.memory_space<vmem>>, vector<1x512xf32>
    %76 = vector.broadcast %75 : vector<1x512xf32> to vector<8x512xf32>
    %77 = arith.mulf %74, %76 : vector<8x512xf32>
    %c15_i32_36 = arith.constant 15 : i32
    %78 = tpu.dynamic_rotate %69 by %c15_i32_36 dim 1 : vector<8x512xf32>, i32 -> vector<8x512xf32>
    %c2_37 = arith.constant 2 : index
    %c0_38 = arith.constant 0 : index
    %79 = vector.load %arg7[%c2_37, %c0_38] : memref<9x512xf32, #tpu.memory_space<vmem>>, vector<1x512xf32>
    %80 = vector.broadcast %79 : vector<1x512xf32> to vector<8x512xf32>
    %81 = arith.mulf %78, %80 : vector<8x512xf32>
    %c1_i32_39 = arith.constant 1 : i32
    %82 = tpu.dynamic_rotate %69 by %c1_i32_39 dim 1 : vector<8x512xf32>, i32 -> vector<8x512xf32>
    %c3_40 = arith.constant 3 : index
    %c0_41 = arith.constant 0 : index
    %83 = vector.load %arg7[%c3_40, %c0_41] : memref<9x512xf32, #tpu.memory_space<vmem>>, vector<1x512xf32>
    %84 = vector.broadcast %83 : vector<1x512xf32> to vector<8x512xf32>
    %85 = arith.mulf %82, %84 : vector<8x512xf32>
    %c511_i32_42 = arith.constant 511 : i32
    %86 = tpu.dynamic_rotate %69 by %c511_i32_42 dim 1 : vector<8x512xf32>, i32 -> vector<8x512xf32>
    %c5_43 = arith.constant 5 : index
    %c0_44 = arith.constant 0 : index
    %87 = vector.load %arg7[%c5_43, %c0_44] : memref<9x512xf32, #tpu.memory_space<vmem>>, vector<1x512xf32>
    %88 = vector.broadcast %87 : vector<1x512xf32> to vector<8x512xf32>
    %89 = arith.mulf %86, %88 : vector<8x512xf32>
    %c497_i32_45 = arith.constant 497 : i32
    %90 = tpu.dynamic_rotate %69 by %c497_i32_45 dim 1 : vector<8x512xf32>, i32 -> vector<8x512xf32>
    %c6_46 = arith.constant 6 : index
    %c0_47 = arith.constant 0 : index
    %91 = vector.load %arg7[%c6_46, %c0_47] : memref<9x512xf32, #tpu.memory_space<vmem>>, vector<1x512xf32>
    %92 = vector.broadcast %91 : vector<1x512xf32> to vector<8x512xf32>
    %93 = arith.mulf %90, %92 : vector<8x512xf32>
    %c496_i32_48 = arith.constant 496 : i32
    %94 = tpu.dynamic_rotate %69 by %c496_i32_48 dim 1 : vector<8x512xf32>, i32 -> vector<8x512xf32>
    %c7_49 = arith.constant 7 : index
    %c0_50 = arith.constant 0 : index
    %95 = vector.load %arg7[%c7_49, %c0_50] : memref<9x512xf32, #tpu.memory_space<vmem>>, vector<1x512xf32>
    %96 = vector.broadcast %95 : vector<1x512xf32> to vector<8x512xf32>
    %97 = arith.mulf %94, %96 : vector<8x512xf32>
    %c495_i32_51 = arith.constant 495 : i32
    %98 = tpu.dynamic_rotate %69 by %c495_i32_51 dim 1 : vector<8x512xf32>, i32 -> vector<8x512xf32>
    %c8_52 = arith.constant 8 : index
    %c0_53 = arith.constant 0 : index
    %99 = vector.load %arg7[%c8_52, %c0_53] : memref<9x512xf32, #tpu.memory_space<vmem>>, vector<1x512xf32>
    %100 = vector.broadcast %99 : vector<1x512xf32> to vector<8x512xf32>
    %101 = arith.mulf %98, %100 : vector<8x512xf32>
    %102 = tpu.concatenate %73, %77, %81, %85, %69, %89, %93, %97, %101 in 0 : vector<8x512xf32>, vector<8x512xf32>, vector<8x512xf32>, vector<8x512xf32>, vector<8x512xf32>, vector<8x512xf32>, vector<8x512xf32>, vector<8x512xf32>, vector<8x512xf32> -> vector<72x512xf32>
    %c0_54 = arith.constant 0 : index
    %c0_55 = arith.constant 0 : index
    %103 = vector.load %arg4[%c0_54, %c0_55] : memref<8x72xf32, #tpu.memory_space<vmem>>, vector<8x72xf32>
    %cst_56 = arith.constant dense<0.000000e+00> : vector<8x512xf32>
    %104 = tpu.matmul %103, %102, %cst_56 {dimension_numbers = #tpu.dot_dimension_numbers<[1], [0], [0], [1], [0, 0, 1, 1], [], []>} : vector<8x72xf32>, vector<72x512xf32>, vector<8x512xf32> -> vector<8x512xf32>
    %105 = vector.broadcast %3 : vector<8x1xf32> to vector<8x512xf32>
    %106 = arith.addf %104, %105 : vector<8x512xf32>
    %cst_57 = arith.constant 5.000000e-01 : f32
    %107 = vector.broadcast %cst_57 : f32 to vector<8x512xf32>
    %108 = arith.mulf %107, %106 : vector<8x512xf32>
    %cst_58 = arith.constant 0.707106769 : f32
    %109 = vector.broadcast %cst_58 : f32 to vector<8x512xf32>
    %110 = arith.mulf %106, %109 : vector<8x512xf32>
    %111 = math.erf %110 : vector<8x512xf32>
    %cst_59 = arith.constant 1.000000e+00 : f32
    %112 = vector.broadcast %cst_59 : f32 to vector<8x512xf32>
    %113 = arith.addf %112, %111 : vector<8x512xf32>
    %114 = arith.mulf %108, %113 : vector<8x512xf32>
    %c0_60 = arith.constant 0 : index
    %c0_61 = arith.constant 0 : index
    %115 = vector.load %arg5[%c0_60, %c0_61] : memref<4x8xf32, #tpu.memory_space<vmem>>, vector<4x8xf32>
    %cst_62 = arith.constant dense<0.000000e+00> : vector<4x512xf32>
    %116 = tpu.matmul %115, %114, %cst_62 {dimension_numbers = #tpu.dot_dimension_numbers<[1], [0], [0], [1], [0, 0, 1, 1], [], []>} : vector<4x8xf32>, vector<8x512xf32>, vector<4x512xf32> -> vector<4x512xf32>
    %117 = vector.broadcast %4 : vector<4x1xf32> to vector<4x512xf32>
    %118 = arith.addf %116, %117 : vector<4x512xf32>
    %119 = arith.addf %118, %0 : vector<4x512xf32>
    %c0_63 = arith.constant 0 : index
    %c0_64 = arith.constant 0 : index
    %120 = vector.load %arg8[%c0_63, %c0_64] : memref<4x512xf32, #tpu.memory_space<vmem>>, vector<4x512xf32>
    tpu.vector_store %arg8[%c0_63, %c0_64], %119 {strides = array<i32>} : memref<4x512xf32, #tpu.memory_space<vmem>>, vector<4x512xf32>,
    return
  }
  func.func @transform_0(%arg0: i32) -> (i32, i32) {
    %c0_i32 = arith.constant 0 : i32
    %c0_i32_0 = arith.constant 0 : i32
    return %c0_i32, %arg0 : i32, i32
  }
  func.func @transform_1(%arg0: i32) -> (i32, i32) {
    %c0_i32 = arith.constant 0 : i32
    %c0_i32_0 = arith.constant 0 : i32
    %c0_i32_1 = arith.constant 0 : i32
    return %c0_i32, %c0_i32_0 : i32, i32
  }
  func.func @transform_2(%arg0: i32) -> (i32, i32) {
    %c0_i32 = arith.constant 0 : i32
    %c0_i32_0 = arith.constant 0 : i32
    %c0_i32_1 = arith.constant 0 : i32
    return %c0_i32, %c0_i32_0 : i32, i32
  }
  func.func @transform_3(%arg0: i32) -> (i32, i32) {
    %c0_i32 = arith.constant 0 : i32
    %c0_i32_0 = arith.constant 0 : i32
    %c0_i32_1 = arith.constant 0 : i32
    return %c0_i32, %c0_i32_0 : i32, i32
  }
  func.func @transform_4(%arg0: i32) -> (i32, i32) {
    %c0_i32 = arith.constant 0 : i32
    %c0_i32_0 = arith.constant 0 : i32
    %c0_i32_1 = arith.constant 0 : i32
    return %c0_i32, %c0_i32_0 : i32, i32
  }
  func.func @transform_5(%arg0: i32) -> (i32, i32) {
    %c0_i32 = arith.constant 0 : i32
    %c0_i32_0 = arith.constant 0 : i32
    %c0_i32_1 = arith.constant 0 : i32
    return %c0_i32, %c0_i32_0 : i32, i32
  }
  func.func @transform_6(%arg0: i32) -> (i32, i32) {
    %c0_i32 = arith.constant 0 : i32
    %c0_i32_0 = arith.constant 0 : i32
    %c0_i32_1 = arith.constant 0 : i32
    return %c0_i32, %c0_i32_0 : i32, i32
  }
  func.func @transform_7(%arg0: i32) -> (i32, i32) {
    %c0_i32 = arith.constant 0 : i32
    %c0_i32_0 = arith.constant 0 : i32
    return %c0_i32, %arg0 : i32, i32
  }
}

</mosaic_0001>

<llo_original>
// kernel: tpu_custom_call.1
$region0: #{tpu_custom_call.1}
  #allocation0 [shape = 'u32[]', space=smem, size = 0x4, offset = 0x4, fixed_abs, tag = 'smem constant byte address 0x4 - core index']
  #allocation1 [shape = 'u32[144,128]{1,0:T(1,128)}', space=vmem, size = 0x12000, scoped, tag = 'internal scratch']
  %s0 = inlined_call_operand.hbm [shape: f32[4,512], index: 0, kind: input, shape index: {}]
  %s1 = inlined_call_operand.hbm [shape: f32[8,4], index: 1, kind: input, shape index: {}]
  %s2 = inlined_call_operand.hbm [shape: f32[8,72], index: 2, kind: input, shape index: {}]
  %s3 = inlined_call_operand.hbm [shape: f32[8,72], index: 3, kind: input, shape index: {}]
  %s4 = inlined_call_operand.hbm [shape: f32[4,8], index: 4, kind: input, shape index: {}]
  %s5 = inlined_call_operand.hbm [shape: f32[32,1], index: 5, kind: input, shape index: {}]
  %s6 = inlined_call_operand.hbm [shape: f32[9,512], index: 6, kind: input, shape index: {}]
  %s7 = inlined_call_operand.hbm [shape: f32[4,512], index: 7, kind: output, shape index: {}]
  %s8 = sld [smem:[#allocation0]]
  $region66: #{tpu_custom_call.1} parent=0
    _
  %s10 = ssub.s32 1, %s8
  %s11 = scalar_select 0, %s10, %s8
  $region1: #{tpu_custom_call.1} parent=0
    #allocation2 [shape = 'u8[8192]{0}', space=vmem, size = 0x2000, scoped, tag = 'input window, operand 0, single buffered']
    #allocation3 [shape = 's32[1]{0}', space=sflag, size = 0x4, scoped, tag = 'scoped memory for tpu_custom_call.1']
    #allocation4 [shape = 's32[1]{0}', space=sflag, size = 0x4, scoped, tag = 'scoped memory for tpu_custom_call.1']
    #allocation5 [shape = 'u8[4096]{0}', space=vmem, size = 0x1000, scoped, tag = 'input window, operand 1, single buffered']
    #allocation6 [shape = 's32[1]{0}', space=sflag, size = 0x4, scoped, tag = 'scoped memory for tpu_custom_call.1']
    #allocation7 [shape = 'u8[4096]{0}', space=vmem, size = 0x1000, scoped, tag = 'input window, operand 2, single buffered']
    #allocation8 [shape = 'u8[4096]{0}', space=vmem, size = 0x1000, scoped, tag = 'input window, operand 3, single buffered']
    #allocation9 [shape = 's32[1]{0}', space=sflag, size = 0x4, scoped, tag = 'scoped memory for tpu_custom_call.1']
    #allocation10 [shape = 'u8[2048]{0}', space=vmem, size = 0x800, scoped, tag = 'input window, operand 4, single buffered']
    #allocation11 [shape = 'u8[16384]{0}', space=vmem, size = 0x4000, scoped, tag = 'input window, operand 5, single buffered']
    #allocation12 [shape = 's32[1]{0}', space=sflag, size = 0x4, scoped, tag = 'scoped memory for tpu_custom_call.1']
    #allocation13 [shape = 'u8[32768]{0}', space=vmem, size = 0x8000, scoped, tag = 'input window, operand 6, single buffered']
    #allocation14 [shape = 'u8[8192]{0}', space=vmem, size = 0x2000, scoped, tag = 'output window, operand 0, single buffered']
    %12 = vsyncpa [#allocation3], 0
    %13 = vsyncpa [#allocation6], 0
    %14 = vsyncpa [#allocation9], 0
    %15 = vsyncpa [#allocation12], 0
    %16 = vsyncpa [#allocation4], 0
    // Predicated region
    $region2: #{tpu_custom_call.1} parent=1 // pred_check
      _
    $region3: #{tpu_custom_call.1} parent=1 // pred_check_branch
      %18 = sbr.rel (0) target = $region5
    $region4: #{tpu_custom_call.1} parent=1 // pred_region
      %s20 = ssub.s32 256, 256
      %21 = vsyncadd [#allocation3], %s20
      %s23 = sshll.u32 [#allocation2], 4
      %s24 = int_to_ptr.vmem [resolvable:$true] %s23
      %26 = dma.hbm_to_vmem [thread:$0]  %s0, 256, %s24, [#allocation3]
    $region5: #{tpu_custom_call.1} parent=1 // pred_fallthru
      _
    // Predicated region
    $region6: #{tpu_custom_call.1} parent=1 // pred_check
      _
    $region7: #{tpu_custom_call.1} parent=1 // pred_check_branch
      %28 = sbr.rel (0) target = $region9
    $region8: #{tpu_custom_call.1} parent=1 // pred_region
      %s30 = ssub.s32 128, 128
      %31 = vsyncadd [#allocation6], %s30
      %s33 = sshll.u32 [#allocation5], 4
      %s34 = int_to_ptr.vmem [resolvable:$true] %s33
      %36 = dma.hbm_to_vmem [thread:$0]  %s1, 128, %s34, [#allocation6]
    $region9: #{tpu_custom_call.1} parent=1 // pred_fallthru
      _
    // Predicated region
    $region10: #{tpu_custom_call.1} parent=1 // pred_check
      _
    $region11: #{tpu_custom_call.1} parent=1 // pred_check_branch
      %38 = sbr.rel (0) target = $region13
    $region12: #{tpu_custom_call.1} parent=1 // pred_region
      %s40 = ssub.s32 128, 128
      %41 = vsyncadd [#allocation6], %s40
      %s43 = sshll.u32 [#allocation7], 4
      %s44 = int_to_ptr.vmem [resolvable:$true] %s43
      %46 = dma.hbm_to_vmem [thread:$0]  %s2, 128, %s44, [#allocation6]
    $region13: #{tpu_custom_call.1} parent=1 // pred_fallthru
      _
    // Predicated region
    $region14: #{tpu_custom_call.1} parent=1 // pred_check
      _
    $region15: #{tpu_custom_call.1} parent=1 // pred_check_branch
      %48 = sbr.rel (0) target = $region17
    $region16: #{tpu_custom_call.1} parent=1 // pred_region
      %s50 = ssub.s32 128, 128
      %51 = vsyncadd [#allocation9], %s50
      %s53 = sshll.u32 [#allocation8], 4
      %s54 = int_to_ptr.vmem [resolvable:$true] %s53
      %56 = dma.hbm_to_vmem [thread:$0]  %s3, 128, %s54, [#allocation9]
    $region17: #{tpu_custom_call.1} parent=1 // pred_fallthru
      _
    // Predicated region
    $region18: #{tpu_custom_call.1} parent=1 // pred_check
      _
    $region19: #{tpu_custom_call.1} parent=1 // pred_check_branch
      %58 = sbr.rel (0) target = $region21
    $region20: #{tpu_custom_call.1} parent=1 // pred_region
      %s60 = ssub.s32 64, 64
      %61 = vsyncadd [#allocation9], %s60
      %s63 = sshll.u32 [#allocation10], 4
      %s64 = int_to_ptr.vmem [resolvable:$true] %s63
      %66 = dma.hbm_to_vmem [thread:$0]  %s4, 64, %s64, [#allocation9]
    $region21: #{tpu_custom_call.1} parent=1 // pred_fallthru
      _
    // Predicated region
    $region22: #{tpu_custom_call.1} parent=1 // pred_check
      _
    $region23: #{tpu_custom_call.1} parent=1 // pred_check_branch
      %68 = sbr.rel (0) target = $region25
    $region24: #{tpu_custom_call.1} parent=1 // pred_region
      %s70 = ssub.s32 512, 512
      %71 = vsyncadd [#allocation12], %s70
      %s72 = sshll.u32 [#allocation11], 4
      %s73 = int_to_ptr.vmem [resolvable:$true] %s72
      %78 = dma.hbm_to_vmem [thread:$0]  %s5, 512, %s73, [#allocation12], 128, 128, 8
    $region25: #{tpu_custom_call.1} parent=1 // pred_fallthru
      _
    // Predicated region
    $region26: #{tpu_custom_call.1} parent=1 // pred_check
      _
    $region27: #{tpu_custom_call.1} parent=1 // pred_check_branch
      %80 = sbr.rel (0) target = $region29
    $region28: #{tpu_custom_call.1} parent=1 // pred_region
      %s82 = ssub.s32 1024, 1024
      %83 = vsyncadd [#allocation12], %s82
      %s84 = sshll.u32 [#allocation13], 4
      %s85 = int_to_ptr.vmem [resolvable:$true] %s84
      %90 = dma.hbm_to_vmem [thread:$0]  %s6, 1024, %s85, [#allocation12], 512, 512, 32
    $region29: #{tpu_custom_call.1} parent=1 // pred_fallthru
      _
    // Predicated region
    $region30: #{tpu_custom_call.1} parent=1 // pred_check
      _
    $region31: #{tpu_custom_call.1} parent=1 // pred_check_branch
      %92 = sbr.rel (0) target = $region33
    $region32: #{tpu_custom_call.1} parent=1 // pred_region
      %93 = dma.done [#allocation3], 256
    $region33: #{tpu_custom_call.1} parent=1 // pred_fallthru
      _
    // Predicated region
    $region34: #{tpu_custom_call.1} parent=1 // pred_check
      _
    $region35: #{tpu_custom_call.1} parent=1 // pred_check_branch
      %95 = sbr.rel (0) target = $region37
    $region36: #{tpu_custom_call.1} parent=1 // pred_region
      %96 = dma.done [#allocation6], 128
    $region37: #{tpu_custom_call.1} parent=1 // pred_fallthru
      _
    // Predicated region
    $region38: #{tpu_custom_call.1} parent=1 // pred_check
      _
    $region39: #{tpu_custom_call.1} parent=1 // pred_check_branch
      %98 = sbr.rel (0) target = $region41
    $region40: #{tpu_custom_call.1} parent=1 // pred_region
      %99 = dma.done [#allocation6], 128
    $region41: #{tpu_custom_call.1} parent=1 // pred_fallthru
      _
    // Predicated region
    $region42: #{tpu_custom_call.1} parent=1 // pred_check
      _
    $region43: #{tpu_custom_call.1} parent=1 // pred_check_branch
      %101 = sbr.rel (0) target = $region45
    $region44: #{tpu_custom_call.1} parent=1 // pred_region
      %102 = dma.done [#allocation9], 128
    $region45: #{tpu_custom_call.1} parent=1 // pred_fallthru
      _
    // Predicated region
    $region46: #{tpu_custom_call.1} parent=1 // pred_check
      _
    $region47: #{tpu_custom_call.1} parent=1 // pred_check_branch
      %104 = sbr.rel (0) target = $region49
    $region48: #{tpu_custom_call.1} parent=1 // pred_region
      %105 = dma.done [#allocation9], 64
    $region49: #{tpu_custom_call.1} parent=1 // pred_fallthru
      _
    // Predicated region
    $region50: #{tpu_custom_call.1} parent=1 // pred_check
      _
    $region51: #{tpu_custom_call.1} parent=1 // pred_check_branch
      %107 = sbr.rel (0) target = $region53
    $region52: #{tpu_custom_call.1} parent=1 // pred_region
      %108 = dma.done [#allocation12], 512
    $region53: #{tpu_custom_call.1} parent=1 // pred_fallthru
      _
    // Predicated region
    $region54: #{tpu_custom_call.1} parent=1 // pred_check
      _
    $region55: #{tpu_custom_call.1} parent=1 // pred_check_branch
      %110 = sbr.rel (0) target = $region57
    $region56: #{tpu_custom_call.1} parent=1 // pred_region
      %111 = dma.done [#allocation12], 1024
    $region57: #{tpu_custom_call.1} parent=1 // pred_fallthru
      _
    %v112 = vld [vmem:[#allocation2] sm:$0xff]
    %v113 = vld [vmem:[#allocation2 + $0x8] sm:$0xff]
    %v114 = vld [vmem:[#allocation11] sm:$0xff]
    %v115 = vld [vmem:[#allocation11 + $0x8] sm:$0xff]
    %v116 = vld [vmem:[#allocation11 + $0x10] sm:$0xff]
    %v117 = vld [vmem:[#allocation11 + $0x18] sm:$0xf]
    %v118 = vmul.f32 %v112, 0.5
    %v119 = vmul.f32 %v113, 0.5
    %v120 = vmul.f32 %v112, 0.70710677
    %v121 = vmul.f32 %v113, 0.70710677
    %v122 = verf.f32.pop %v120
    %v123 = verf.f32.pop %v121
    %v124 = vadd.f32 %v122, 1.0
    %v125 = vadd.f32 %v123, 1.0
    %v126 = vmul.f32 %v118, %v124
    %v127 = vmul.f32 %v119, %v125
    %v128 = vld [vmem:[#allocation5] sm:$0xff]
    %130 = vset.pattern.permute.xlu0 0
    %131 = vperm.xlu0 %130, %v114
    %v132 = vpop.permute.xlu0 %131
    %v136 = vcombine.high %v126, %v126
    %v137 = vcombine.high %v127, %v127
    %vm138 = vcmask 31744
    %v140 = vsel %vm138, %v128, 0
    %vm142 = vcmask 1043456
    %v143 = vsel %vm142, %v126, 0
    %v145 = vsel %vm142, %v136, 0
    %v147 = vsel %vm142, %v127, 0
    %v149 = vsel %vm142, %v137, 0
    %151 = vmatprep.subr.mxu0 %v145
    %152 = vmatpush1.msra.mxu0 %v143
    %153 = vmatprep.subr.mxu0 0.0
    %154 = vmatpush1.msra.mxu0 0.0
    %155 = vmatprep.subr.mxu0 0.0
    %156 = vmatpush1.msra.mxu0 0.0
    %157 = vmatprep.subr.mxu0 0.0
    %158 = vmatpush1.msra.mxu0 0.0
    %159 = vmatprep.subr.mxu0 0.0
    %160 = vmatpush1.msra.mxu0 0.0
    %161 = vmatprep.subr.mxu0 0.0
    %162 = vmatpush1.msra.mxu0 0.0
    %163 = vmatprep.subr.mxu0 0.0
    %164 = vmatpush1.msra.mxu0 0.0
    %165 = vmatprep.subr.mxu0 0.0
    %166 = vmatpush1.msra.mxu0 0.0
    %167 = vmatprep.subr.mxu0 0.0
    %168 = vmatpush1.msra.mxu0 0.0
    %169 = vmatprep.subr.mxu0 0.0
    %170 = vmatpush1.msra.mxu0 0.0
    %171 = vmatprep.subr.mxu0 0.0
    %172 = vmatpush1.msra.mxu0 0.0
    %173 = vmatprep.subr.mxu0 0.0
    %174 = vmatpush1.msra.mxu0 0.0
    %175 = vmatprep.subr.mxu0 0.0
    %176 = vmatpush1.msra.mxu0 0.0
    %177 = vmatprep.subr.mxu0 0.0
    %178 = vmatpush1.msra.mxu0 0.0
    %179 = vmatprep.subr.mxu0 0.0
    %180 = vmatpush1.msra.mxu0 0.0
    %181 = vmatprep.subr.mxu0 0.0
    %182 = vmatpush1.msra.mxu0 0.0
    %183 = vmatprep.subr.mxu0 0.0
    %184 = vmatpush1.msra.mxu0 0.0
    %185 = vmatprep.subr.mxu0 0.0
    %186 = vmatpush1.msra.mxu0 0.0
    %187 = vmatprep.subr.mxu0 0.0
    %188 = vmatpush1.msra.mxu0 0.0
    %189 = vmatprep.subr.mxu0 0.0
    %190 = vmatpush1.msra.mxu0 0.0
    %191 = vmatprep.subr.mxu0 0.0
    %192 = vmatpush1.msra.mxu0 0.0
    %193 = vmatprep.subr.mxu0 0.0
    %194 = vmatpush1.msra.mxu0 0.0
    %195 = vmatprep.subr.mxu0 0.0
    %196 = vmatpush1.msra.mxu0 0.0
    %197 = vmatprep.subr.mxu0 0.0
    %198 = vmatpush1.msra.mxu0 0.0
    %199 = vmatprep.subr.mxu0 0.0
    %200 = vmatpush1.msra.mxu0 0.0
    %201 = vmatprep.subr.mxu0 0.0
    %202 = vmatpush1.msra.mxu0 0.0
    %203 = vmatprep.subr.mxu0 0.0
    %204 = vmatpush1.msra.mxu0 0.0
    %205 = vmatprep.subr.mxu0 0.0
    %206 = vmatpush1.msra.mxu0 0.0
    %207 = vmatprep.subr.mxu0 0.0
    %208 = vmatpush1.msra.mxu0 0.0
    %209 = vmatprep.subr.mxu0 0.0
    %210 = vmatpush1.msra.mxu0 0.0
    %211 = vmatprep.subr.mxu0 0.0
    %212 = vmatpush1.msra.mxu0 0.0
    %213 = vmatprep.subr.mxu0 0.0
    %214 = vmatpush1.msra.mxu0 0.0
    %215 = vmatprep.mubr.f32.mxu0 0.0
    %216 = vmatmul.mubr.f32.gmra.mrb[0].mxu0 %v140
    %v217 = vpop.f32.mrb[0].mxu0
    %v218 = vadd.f32 %v132, %v217
    %v219 = vpop.f32.mrb[0].mxu0
    %v220 = vadd.f32 %v132, %v219
    %221 = vdwg.mxu0
    %222 = vmatprep.subr.mxu0 %v149
    %223 = vmatpush1.msra.mxu0 %v147
    %224 = vmatprep.subr.mxu0 0.0
    %225 = vmatpush1.msra.mxu0 0.0
    %226 = vmatprep.subr.mxu0 0.0
    %227 = vmatpush1.msra.mxu0 0.0
    %228 = vmatprep.subr.mxu0 0.0
    %229 = vmatpush1.msra.mxu0 0.0
    %230 = vmatprep.subr.mxu0 0.0
    %231 = vmatpush1.msra.mxu0 0.0
    %232 = vmatprep.subr.mxu0 0.0
    %233 = vmatpush1.msra.mxu0 0.0
    %234 = vmatprep.subr.mxu0 0.0
    %235 = vmatpush1.msra.mxu0 0.0
    %236 = vmatprep.subr.mxu0 0.0
    %237 = vmatpush1.msra.mxu0 0.0
    %238 = vmatprep.subr.mxu0 0.0
    %239 = vmatpush1.msra.mxu0 0.0
    %240 = vmatprep.subr.mxu0 0.0
    %241 = vmatpush1.msra.mxu0 0.0
    %242 = vmatprep.subr.mxu0 0.0
    %243 = vmatpush1.msra.mxu0 0.0
    %244 = vmatprep.subr.mxu0 0.0
    %245 = vmatpush1.msra.mxu0 0.0
    %246 = vmatprep.subr.mxu0 0.0
    %247 = vmatpush1.msra.mxu0 0.0
    %248 = vmatprep.subr.mxu0 0.0
    %249 = vmatpush1.msra.mxu0 0.0
    %250 = vmatprep.subr.mxu0 0.0
    %251 = vmatpush1.msra.mxu0 0.0
    %252 = vmatprep.subr.mxu0 0.0
    %253 = vmatpush1.msra.mxu0 0.0
    %254 = vmatprep.subr.mxu0 0.0
    %255 = vmatpush1.msra.mxu0 0.0
    %256 = vmatprep.subr.mxu0 0.0
    %257 = vmatpush1.msra.mxu0 0.0
    %258 = vmatprep.subr.mxu0 0.0
    %259 = vmatpush1.msra.mxu0 0.0
    %260 = vmatprep.subr.mxu0 0.0
    %261 = vmatpush1.msra.mxu0 0.0
    %262 = vmatprep.subr.mxu0 0.0
    %263 = vmatpush1.msra.mxu0 0.0
    %264 = vmatprep.subr.mxu0 0.0
    %265 = vmatpush1.msra.mxu0 0.0
    %266 = vmatprep.subr.mxu0 0.0
    %267 = vmatpush1.msra.mxu0 0.0
    %268 = vmatprep.subr.mxu0 0.0
    %269 = vmatpush1.msra.mxu0 0.0
    %270 = vmatprep.subr.mxu0 0.0
    %271 = vmatpush1.msra.mxu0 0.0
    %272 = vmatprep.subr.mxu0 0.0
    %273 = vmatpush1.msra.mxu0 0.0
    %274 = vmatprep.subr.mxu0 0.0
    %275 = vmatpush1.msra.mxu0 0.0
    %276 = vmatprep.subr.mxu0 0.0
    %277 = vmatpush1.msra.mxu0 0.0
    %278 = vmatprep.subr.mxu0 0.0
    %279 = vmatpush1.msra.mxu0 0.0
    %280 = vmatprep.subr.mxu0 0.0
    %281 = vmatpush1.msra.mxu0 0.0
    %282 = vmatprep.subr.mxu0 0.0
    %283 = vmatpush1.msra.mxu0 0.0
    %284 = vmatprep.subr.mxu0 0.0
    %285 = vmatpush1.msra.mxu0 0.0
    %286 = vmatprep.mubr.f32.mxu0 0.0
    %287 = vmatmul.mubr.f32.gmra.mrb[0].mxu0 %v140
    %v288 = vpop.f32.mrb[0].mxu0
    %v289 = vadd.f32 %v132, %v288
    %v290 = vpop.f32.mrb[0].mxu0
    %v291 = vadd.f32 %v132, %v290
    %292 = vdwg.mxu0
    %v293 = vmul.f32 %v218, 0.5
    %v294 = vmul.f32 %v220, 0.5
    %v295 = vmul.f32 %v289, 0.5
    %v296 = vmul.f32 %v291, 0.5
    %v297 = vmul.f32 %v218, 0.70710677
    %v298 = vmul.f32 %v220, 0.70710677
    %v299 = vmul.f32 %v289, 0.70710677
    %v300 = vmul.f32 %v291, 0.70710677
    %v301 = verf.f32.pop %v297
    %v302 = verf.f32.pop %v298
    %v303 = verf.f32.pop %v299
    %v304 = verf.f32.pop %v300
    %v305 = vadd.f32 %v301, 1.0
    %v306 = vadd.f32 %v302, 1.0
    %v307 = vadd.f32 %v303, 1.0
    %v308 = vadd.f32 %v304, 1.0
    %v309 = vmul.f32 %v293, %v305
    %v310 = vmul.f32 %v294, %v306
    %v311 = vmul.f32 %v295, %v307
    %v312 = vmul.f32 %v296, %v308
    %313 = vrot.lane.b32.xlu0 %v309, 17
    %v314 = vpop.permute.xlu0 %313
    %315 = vrot.lane.b32.xlu0 %v310, 17
    %v316 = vpop.permute.xlu0 %315
    %317 = vrot.lane.b32.xlu0 %v311, 17
    %v318 = vpop.permute.xlu0 %317
    %319 = vrot.lane.b32.xlu0 %v312, 17
    %v320 = vpop.permute.xlu0 %319
    %v321 = vlaneseq
    %v322 = vand.u32 %v321, 127
    %vm323 = vcmp.lt.s32.totalorder %v322, 17
    %v324 = vsel %vm323, %v318, %v320
    %v325 = vsel %vm323, %v316, %v318
    %v326 = vsel %vm323, %v314, %v316
    %v327 = vsel %vm323, %v320, %v314
    %v328 = vld [vmem:[#allocation13] ss:$8 sm:$0xf]
    %v330 = vlaneseq
    %v331 = vshrl.u32 %v330, 7
    %v332 = vsub.s32 0, %v331
    %v333 = vrot.slane %v328, %v332
    %v334 = vlaneseq
    %v335 = vshrl.u32 %v334, 7
    %v336 = vsub.s32 1, %v335
    %v337 = vrot.slane %v328, %v336
    %v338 = vlaneseq
    %v339 = vshrl.u32 %v338, 7
    %v340 = vsub.s32 2, %v339
    %v341 = vrot.slane %v328, %v340
    %v342 = vlaneseq
    %v343 = vshrl.u32 %v342, 7
    %v344 = vsub.s32 3, %v343
    %v345 = vrot.slane %v328, %v344
    %v350 = vmul.f32 %v327, %v333
    %v351 = vmul.f32 %v326, %v337
    %v352 = vmul.f32 %v325, %v341
    %v353 = vmul.f32 %v324, %v345
    %354 = vrot.lane.b32.xlu0 %v309, 16
    %v355 = vpop.permute.xlu0 %354
    %356 = vrot.lane.b32.xlu0 %v310, 16
    %v357 = vpop.permute.xlu0 %356
    %358 = vrot.lane.b32.xlu0 %v311, 16
    %v359 = vpop.permute.xlu0 %358
    %360 = vrot.lane.b32.xlu0 %v312, 16
    %v361 = vpop.permute.xlu0 %360
    %vm362 = vcmp.lt.s32.totalorder %v322, 16
    %v363 = vsel %vm362, %v359, %v361
    %v364 = vsel %vm362, %v357, %v359
    %v365 = vsel %vm362, %v355, %v357
    %v366 = vsel %vm362, %v361, %v355
    %s367 = scalar_lea.vmem [#allocation13], 1
    %v368 = vld [vmem:[%s367] ss:$8 sm:$0xf]
    %v370 = vlaneseq
    %v371 = vshrl.u32 %v370, 7
    %v372 = vsub.s32 0, %v371
    %v373 = vrot.slane %v368, %v372
    %v374 = vlaneseq
    %v375 = vshrl.u32 %v374, 7
    %v376 = vsub.s32 1, %v375
    %v377 = vrot.slane %v368, %v376
    %v378 = vlaneseq
    %v379 = vshrl.u32 %v378, 7
    %v380 = vsub.s32 2, %v379
    %v381 = vrot.slane %v368, %v380
    %v382 = vlaneseq
    %v383 = vshrl.u32 %v382, 7
    %v384 = vsub.s32 3, %v383
    %v385 = vrot.slane %v368, %v384
    %v390 = vmul.f32 %v366, %v373
    %v391 = vmul.f32 %v365, %v377
    %v392 = vmul.f32 %v364, %v381
    %v393 = vmul.f32 %v363, %v385
    %394 = vrot.lane.b32.xlu0 %v309, 15
    %v395 = vpop.permute.xlu0 %394
    %396 = vrot.lane.b32.xlu0 %v310, 15
    %v397 = vpop.permute.xlu0 %396
    %398 = vrot.lane.b32.xlu0 %v311, 15
    %v399 = vpop.permute.xlu0 %398
    %400 = vrot.lane.b32.xlu0 %v312, 15
    %v401 = vpop.permute.xlu0 %400
    %vm402 = vcmp.lt.s32.totalorder %v322, 15
    %v403 = vsel %vm402, %v399, %v401
    %v404 = vsel %vm402, %v397, %v399
    %v405 = vsel %vm402, %v395, %v397
    %v406 = vsel %vm402, %v401, %v395
    %s407 = scalar_lea.vmem [#allocation13], 2
    %v408 = vld [vmem:[%s407] ss:$8 sm:$0xf]
    %v410 = vlaneseq
    %v411 = vshrl.u32 %v410, 7
    %v412 = vsub.s32 0, %v411
    %v413 = vrot.slane %v408, %v412
    %v414 = vlaneseq
    %v415 = vshrl.u32 %v414, 7
    %v416 = vsub.s32 1, %v415
    %v417 = vrot.slane %v408, %v416
    %v418 = vlaneseq
    %v419 = vshrl.u32 %v418, 7
    %v420 = vsub.s32 2, %v419
    %v421 = vrot.slane %v408, %v420
    %v422 = vlaneseq
    %v423 = vshrl.u32 %v422, 7
    %v424 = vsub.s32 3, %v423
    %v425 = vrot.slane %v408, %v424
    %v430 = vmul.f32 %v406, %v413
    %v431 = vmul.f32 %v405, %v417
    %v432 = vmul.f32 %v404, %v421
    %v433 = vmul.f32 %v403, %v425
    %434 = vrot.lane.b32.xlu0 %v309, 1
    %v435 = vpop.permute.xlu0 %434
    %436 = vrot.lane.b32.xlu0 %v310, 1
    %v437 = vpop.permute.xlu0 %436
    %438 = vrot.lane.b32.xlu0 %v311, 1
    %v439 = vpop.permute.xlu0 %438
    %440 = vrot.lane.b32.xlu0 %v312, 1
    %v441 = vpop.permute.xlu0 %440
    %vm442 = vcmp.lt.s32.totalorder %v322, 1
    %v443 = vsel %vm442, %v439, %v441
    %v444 = vsel %vm442, %v437, %v439
    %v445 = vsel %vm442, %v435, %v437
    %v446 = vsel %vm442, %v441, %v435
    %s447 = scalar_lea.vmem [#allocation13], 3
    %v448 = vld [vmem:[%s447] ss:$8 sm:$0xf]
    %v450 = vlaneseq
    %v451 = vshrl.u32 %v450, 7
    %v452 = vsub.s32 0, %v451
    %v453 = vrot.slane %v448, %v452
    %v454 = vlaneseq
    %v455 = vshrl.u32 %v454, 7
    %v456 = vsub.s32 1, %v455
    %v457 = vrot.slane %v448, %v456
    %v458 = vlaneseq
    %v459 = vshrl.u32 %v458, 7
    %v460 = vsub.s32 2, %v459
    %v461 = vrot.slane %v448, %v460
    %v462 = vlaneseq
    %v463 = vshrl.u32 %v462, 7
    %v464 = vsub.s32 3, %v463
    %v465 = vrot.slane %v448, %v464
    %v470 = vmul.f32 %v446, %v453
    %v471 = vmul.f32 %v445, %v457
    %v472 = vmul.f32 %v444, %v461
    %v473 = vmul.f32 %v443, %v465
    %474 = vrot.lane.b32.xlu0 %v309, 127
    %v475 = vpop.permute.xlu0 %474
    %476 = vrot.lane.b32.xlu0 %v310, 127
    %v477 = vpop.permute.xlu0 %476
    %478 = vrot.lane.b32.xlu0 %v311, 127
    %v479 = vpop.permute.xlu0 %478
    %480 = vrot.lane.b32.xlu0 %v312, 127
    %v481 = vpop.permute.xlu0 %480
    %vm482 = vcmp.lt.s32.totalorder %v322, 127
    %v483 = vsel %vm482, %v479, %v481
    %v484 = vsel %vm482, %v477, %v479
    %v485 = vsel %vm482, %v475, %v477
    %v486 = vsel %vm482, %v481, %v475
    %s487 = scalar_lea.vmem [#allocation13], 5
    %v488 = vld [vmem:[%s487] ss:$8 sm:$0xf]
    %v490 = vlaneseq
    %v491 = vshrl.u32 %v490, 7
    %v492 = vsub.s32 0, %v491
    %v493 = vrot.slane %v488, %v492
    %v494 = vlaneseq
    %v495 = vshrl.u32 %v494, 7
    %v496 = vsub.s32 1, %v495
    %v497 = vrot.slane %v488, %v496
    %v498 = vlaneseq
    %v499 = vshrl.u32 %v498, 7
    %v500 = vsub.s32 2, %v499
    %v501 = vrot.slane %v488, %v500
    %v502 = vlaneseq
    %v503 = vshrl.u32 %v502, 7
    %v504 = vsub.s32 3, %v503
    %v505 = vrot.slane %v488, %v504
    %v510 = vmul.f32 %v485, %v493
    %v511 = vmul.f32 %v484, %v497
    %v512 = vmul.f32 %v483, %v501
    %v513 = vmul.f32 %v486, %v505
    %514 = vrot.lane.b32.xlu0 %v309, 113
    %v515 = vpop.permute.xlu0 %514
    %516 = vrot.lane.b32.xlu0 %v310, 113
    %v517 = vpop.permute.xlu0 %516
    %518 = vrot.lane.b32.xlu0 %v311, 113
    %v519 = vpop.permute.xlu0 %518
    %520 = vrot.lane.b32.xlu0 %v312, 113
    %v521 = vpop.permute.xlu0 %520
    %vm522 = vcmp.lt.s32.totalorder %v322, 113
    %v523 = vsel %vm522, %v519, %v521
    %v524 = vsel %vm522, %v517, %v519
    %v525 = vsel %vm522, %v515, %v517
    %v526 = vsel %vm522, %v521, %v515
    %s527 = scalar_lea.vmem [#allocation13], 6
    %v528 = vld [vmem:[%s527] ss:$8 sm:$0xf]
    %v530 = vlaneseq
    %v531 = vshrl.u32 %v530, 7
    %v532 = vsub.s32 0, %v531
    %v533 = vrot.slane %v528, %v532
    %v534 = vlaneseq
    %v535 = vshrl.u32 %v534, 7
    %v536 = vsub.s32 1, %v535
    %v537 = vrot.slane %v528, %v536
    %v538 = vlaneseq
    %v539 = vshrl.u32 %v538, 7
    %v540 = vsub.s32 2, %v539
    %v541 = vrot.slane %v528, %v540
    %v542 = vlaneseq
    %v543 = vshrl.u32 %v542, 7
    %v544 = vsub.s32 3, %v543
    %v545 = vrot.slane %v528, %v544
    %v550 = vmul.f32 %v525, %v533
    %v551 = vmul.f32 %v524, %v537
    %v552 = vmul.f32 %v523, %v541
    %v553 = vmul.f32 %v526, %v545
    %554 = vrot.lane.b32.xlu0 %v309, 112
    %v555 = vpop.permute.xlu0 %554
    %556 = vrot.lane.b32.xlu0 %v310, 112
    %v557 = vpop.permute.xlu0 %556
    %558 = vrot.lane.b32.xlu0 %v311, 112
    %v559 = vpop.permute.xlu0 %558
    %560 = vrot.lane.b32.xlu0 %v312, 112
    %v561 = vpop.permute.xlu0 %560
    %vm562 = vcmp.lt.s32.totalorder %v322, 112
    %v563 = vsel %vm562, %v559, %v561
    %v564 = vsel %vm562, %v557, %v559
    %v565 = vsel %vm562, %v555, %v557
    %v566 = vsel %vm562, %v561, %v555
    %s567 = scalar_lea.vmem [#allocation13], 7
    %v568 = vld [vmem:[%s567] ss:$8 sm:$0xf]
    %v570 = vlaneseq
    %v571 = vshrl.u32 %v570, 7
    %v572 = vsub.s32 0, %v571
    %v573 = vrot.slane %v568, %v572
    %v574 = vlaneseq
    %v575 = vshrl.u32 %v574, 7
    %v576 = vsub.s32 1, %v575
    %v577 = vrot.slane %v568, %v576
    %v578 = vlaneseq
    %v579 = vshrl.u32 %v578, 7
    %v580 = vsub.s32 2, %v579
    %v581 = vrot.slane %v568, %v580
    %v582 = vlaneseq
    %v583 = vshrl.u32 %v582, 7
    %v584 = vsub.s32 3, %v583
    %v585 = vrot.slane %v568, %v584
    %v590 = vmul.f32 %v565, %v573
    %v591 = vmul.f32 %v564, %v577
    %v592 = vmul.f32 %v563, %v581
    %v593 = vmul.f32 %v566, %v585
    %594 = vrot.lane.b32.xlu0 %v309, 111
    %v595 = vpop.permute.xlu0 %594
    %596 = vrot.lane.b32.xlu0 %v310, 111
    %v597 = vpop.permute.xlu0 %596
    %598 = vrot.lane.b32.xlu0 %v311, 111
    %v599 = vpop.permute.xlu0 %598
    %600 = vrot.lane.b32.xlu0 %v312, 111
    %v601 = vpop.permute.xlu0 %600
    %vm602 = vcmp.lt.s32.totalorder %v322, 111
    %v603 = vsel %vm602, %v599, %v601
    %v604 = vsel %vm602, %v597, %v599
    %v605 = vsel %vm602, %v595, %v597
    %v606 = vsel %vm602, %v601, %v595
    %s607 = scalar_lea.vmem [#allocation13], 32
    %v608 = vld [vmem:[%s607] ss:$8 sm:$0xf]
    %v610 = vlaneseq
    %v611 = vshrl.u32 %v610, 7
    %v612 = vsub.s32 0, %v611
    %v613 = vrot.slane %v608, %v612
    %v614 = vlaneseq
    %v615 = vshrl.u32 %v614, 7
    %v616 = vsub.s32 1, %v615
    %v617 = vrot.slane %v608, %v616
    %v618 = vlaneseq
    %v619 = vshrl.u32 %v618, 7
    %v620 = vsub.s32 2, %v619
    %v621 = vrot.slane %v608, %v620
    %v622 = vlaneseq
    %v623 = vshrl.u32 %v622, 7
    %v624 = vsub.s32 3, %v623
    %v625 = vrot.slane %v608, %v624
    %v630 = vmul.f32 %v605, %v613
    %v631 = vmul.f32 %v604, %v617
    %v632 = vmul.f32 %v603, %v621
    %v633 = vmul.f32 %v606, %v625
    %v634 = vld [vmem:[#allocation7] sm:$0xff]
    %636 = vset.pattern.permute.xlu0 0
    %637 = vperm.xlu0 %636, %v115
    %v638 = vpop.permute.xlu0 %637
    %vm640 = vcmask 588800
    %v642 = vsel %vm640, %v634, 0
    %644 = vmatprep.subr.mxu0 %v351
    %645 = vmatpush1.msra.mxu0 %v350
    %646 = vmatprep.subr.mxu0 %v391
    %647 = vmatpush1.msra.mxu0 %v390
    %648 = vmatprep.subr.mxu0 %v431
    %649 = vmatpush1.msra.mxu0 %v430
    %650 = vmatprep.subr.mxu0 %v471
    %651 = vmatpush1.msra.mxu0 %v470
    %652 = vmatprep.subr.mxu0 %v310
    %653 = vmatpush1.msra.mxu0 %v309
    %654 = vmatprep.subr.mxu0 %v511
    %655 = vmatpush1.msra.mxu0 %v510
    %656 = vmatprep.subr.mxu0 %v551
    %657 = vmatpush1.msra.mxu0 %v550
    %658 = vmatprep.subr.mxu0 %v591
    %659 = vmatpush1.msra.mxu0 %v590
    %660 = vmatprep.subr.mxu0 %v631
    %661 = vmatpush1.msra.mxu0 %v630
    %662 = vmatprep.subr.mxu0 0.0
    %663 = vmatpush1.msra.mxu0 0.0
    %664 = vmatprep.subr.mxu0 0.0
    %665 = vmatpush1.msra.mxu0 0.0
    %666 = vmatprep.subr.mxu0 0.0
    %667 = vmatpush1.msra.mxu0 0.0
    %668 = vmatprep.subr.mxu0 0.0
    %669 = vmatpush1.msra.mxu0 0.0
    %670 = vmatprep.subr.mxu0 0.0
    %671 = vmatpush1.msra.mxu0 0.0
    %672 = vmatprep.subr.mxu0 0.0
    %673 = vmatpush1.msra.mxu0 0.0
    %674 = vmatprep.subr.mxu0 0.0
    %675 = vmatpush1.msra.mxu0 0.0
    %676 = vmatprep.subr.mxu0 0.0
    %677 = vmatpush1.msra.mxu0 0.0
    %678 = vmatprep.subr.mxu0 0.0
    %679 = vmatpush1.msra.mxu0 0.0
    %680 = vmatprep.subr.mxu0 0.0
    %681 = vmatpush1.msra.mxu0 0.0
    %682 = vmatprep.subr.mxu0 0.0
    %683 = vmatpush1.msra.mxu0 0.0
    %684 = vmatprep.subr.mxu0 0.0
    %685 = vmatpush1.msra.mxu0 0.0
    %686 = vmatprep.subr.mxu0 0.0
    %687 = vmatpush1.msra.mxu0 0.0
    %688 = vmatprep.subr.mxu0 0.0
    %689 = vmatpush1.msra.mxu0 0.0
    %690 = vmatprep.subr.mxu0 0.0
    %691 = vmatpush1.msra.mxu0 0.0
    %692 = vmatprep.subr.mxu0 0.0
    %693 = vmatpush1.msra.mxu0 0.0
    %694 = vmatprep.subr.mxu0 0.0
    %695 = vmatpush1.msra.mxu0 0.0
    %696 = vmatprep.subr.mxu0 0.0
    %697 = vmatpush1.msra.mxu0 0.0
    %698 = vmatprep.subr.mxu0 0.0
    %699 = vmatpush1.msra.mxu0 0.0
    %700 = vmatprep.subr.mxu0 0.0
    %701 = vmatpush1.msra.mxu0 0.0
    %702 = vmatprep.subr.mxu0 0.0
    %703 = vmatpush1.msra.mxu0 0.0
    %704 = vmatprep.subr.mxu0 0.0
    %705 = vmatpush1.msra.mxu0 0.0
    %706 = vmatprep.subr.mxu0 0.0
    %707 = vmatpush1.msra.mxu0 0.0
    %708 = vmatprep.mubr.f32.mxu0 0.0
    %709 = vmatmul.mubr.f32.gmra.mrb[0].mxu0 %v642
    %v710 = vpop.f32.mrb[0].mxu0
    %v711 = vadd.f32 %v638, %v710
    %v712 = vpop.f32.mrb[0].mxu0
    %v713 = vadd.f32 %v638, %v712
    %714 = vdwg.mxu0
    %715 = vmatprep.subr.mxu0 %v353
    %716 = vmatpush1.msra.mxu0 %v352
    %717 = vmatprep.subr.mxu0 %v393
    %718 = vmatpush1.msra.mxu0 %v392
    %719 = vmatprep.subr.mxu0 %v433
    %720 = vmatpush1.msra.mxu0 %v432
    %721 = vmatprep.subr.mxu0 %v473
    %722 = vmatpush1.msra.mxu0 %v472
    %723 = vmatprep.subr.mxu0 %v312
    %724 = vmatpush1.msra.mxu0 %v311
    %725 = vmatprep.subr.mxu0 %v513
    %726 = vmatpush1.msra.mxu0 %v512
    %727 = vmatprep.subr.mxu0 %v553
    %728 = vmatpush1.msra.mxu0 %v552
    %729 = vmatprep.subr.mxu0 %v593
    %730 = vmatpush1.msra.mxu0 %v592
    %731 = vmatprep.subr.mxu0 %v633
    %732 = vmatpush1.msra.mxu0 %v632
    %733 = vmatprep.subr.mxu0 0.0
    %734 = vmatpush1.msra.mxu0 0.0
    %735 = vmatprep.subr.mxu0 0.0
    %736 = vmatpush1.msra.mxu0 0.0
    %737 = vmatprep.subr.mxu0 0.0
    %738 = vmatpush1.msra.mxu0 0.0
    %739 = vmatprep.subr.mxu0 0.0
    %740 = vmatpush1.msra.mxu0 0.0
    %741 = vmatprep.subr.mxu0 0.0
    %742 = vmatpush1.msra.mxu0 0.0
    %743 = vmatprep.subr.mxu0 0.0
    %744 = vmatpush1.msra.mxu0 0.0
    %745 = vmatprep.subr.mxu0 0.0
    %746 = vmatpush1.msra.mxu0 0.0
    %747 = vmatprep.subr.mxu0 0.0
    %748 = vmatpush1.msra.mxu0 0.0
    %749 = vmatprep.subr.mxu0 0.0
    %750 = vmatpush1.msra.mxu0 0.0
    %751 = vmatprep.subr.mxu0 0.0
    %752 = vmatpush1.msra.mxu0 0.0
    %753 = vmatprep.subr.mxu0 0.0
    %754 = vmatpush1.msra.mxu0 0.0
    %755 = vmatprep.subr.mxu0 0.0
    %756 = vmatpush1.msra.mxu0 0.0
    %757 = vmatprep.subr.mxu0 0.0
    %758 = vmatpush1.msra.mxu0 0.0
    %759 = vmatprep.subr.mxu0 0.0
    %760 = vmatpush1.msra.mxu0 0.0
    %761 = vmatprep.subr.mxu0 0.0
    %762 = vmatpush1.msra.mxu0 0.0
    %763 = vmatprep.subr.mxu0 0.0
    %764 = vmatpush1.msra.mxu0 0.0
    %765 = vmatprep.subr.mxu0 0.0
    %766 = vmatpush1.msra.mxu0 0.0
    %767 = vmatprep.subr.mxu0 0.0
    %768 = vmatpush1.msra.mxu0 0.0
    %769 = vmatprep.subr.mxu0 0.0
    %770 = vmatpush1.msra.mxu0 0.0
    %771 = vmatprep.subr.mxu0 0.0
    %772 = vmatpush1.msra.mxu0 0.0
    %773 = vmatprep.subr.mxu0 0.0
    %774 = vmatpush1.msra.mxu0 0.0
    %775 = vmatprep.subr.mxu0 0.0
    %776 = vmatpush1.msra.mxu0 0.0
    %777 = vmatprep.subr.mxu0 0.0
    %778 = vmatpush1.msra.mxu0 0.0
    %779 = vmatprep.mubr.f32.mxu0 0.0
    %780 = vmatmul.mubr.f32.gmra.mrb[0].mxu0 %v642
    %v781 = vpop.f32.mrb[0].mxu0
    %v782 = vadd.f32 %v638, %v781
    %v783 = vpop.f32.mrb[0].mxu0
    %v784 = vadd.f32 %v638, %v783
    %785 = vdwg.mxu0
    %v786 = vmul.f32 %v711, 0.5
    %v787 = vmul.f32 %v713, 0.5
    %v788 = vmul.f32 %v782, 0.5
    %v789 = vmul.f32 %v784, 0.5
    %v790 = vmul.f32 %v711, 0.70710677
    %v791 = vmul.f32 %v713, 0.70710677
    %v792 = vmul.f32 %v782, 0.70710677
    %v793 = vmul.f32 %v784, 0.70710677
    %v794 = verf.f32.pop %v790
    %v795 = verf.f32.pop %v791
    %v796 = verf.f32.pop %v792
    %v797 = verf.f32.pop %v793
    %v798 = vadd.f32 %v794, 1.0
    %v799 = vadd.f32 %v795, 1.0
    %v800 = vadd.f32 %v796, 1.0
    %v801 = vadd.f32 %v797, 1.0
    %v802 = vmul.f32 %v786, %v798
    %v803 = vmul.f32 %v787, %v799
    %v804 = vmul.f32 %v788, %v800
    %v805 = vmul.f32 %v789, %v801
    %806 = vrot.lane.b32.xlu0 %v802, 17
    %v807 = vpop.permute.xlu0 %806
    %808 = vrot.lane.b32.xlu0 %v803, 17
    %v809 = vpop.permute.xlu0 %808
    %810 = vrot.lane.b32.xlu0 %v804, 17
    %v811 = vpop.permute.xlu0 %810
    %812 = vrot.lane.b32.xlu0 %v805, 17
    %v813 = vpop.permute.xlu0 %812
    %v814 = vsel %vm323, %v811, %v813
    %v815 = vsel %vm323, %v809, %v811
    %v816 = vsel %vm323, %v807, %v809
    %v817 = vsel %vm323, %v813, %v807
    %v818 = vmul.f32 %v817, %v333
    %v819 = vmul.f32 %v816, %v337
    %v820 = vmul.f32 %v815, %v341
    %v821 = vmul.f32 %v814, %v345
    %822 = vrot.lane.b32.xlu0 %v802, 16
    %v823 = vpop.permute.xlu0 %822
    %824 = vrot.lane.b32.xlu0 %v803, 16
    %v825 = vpop.permute.xlu0 %824
    %826 = vrot.lane.b32.xlu0 %v804, 16
    %v827 = vpop.permute.xlu0 %826
    %828 = vrot.lane.b32.xlu0 %v805, 16
    %v829 = vpop.permute.xlu0 %828
    %v830 = vsel %vm362, %v827, %v829
    %v831 = vsel %vm362, %v825, %v827
    %v832 = vsel %vm362, %v823, %v825
    %v833 = vsel %vm362, %v829, %v823
    %v834 = vmul.f32 %v833, %v373
    %v835 = vmul.f32 %v832, %v377
    %v836 = vmul.f32 %v831, %v381
    %v837 = vmul.f32 %v830, %v385
    %838 = vrot.lane.b32.xlu0 %v802, 15
    %v839 = vpop.permute.xlu0 %838
    %840 = vrot.lane.b32.xlu0 %v803, 15
    %v841 = vpop.permute.xlu0 %840
    %842 = vrot.lane.b32.xlu0 %v804, 15
    %v843 = vpop.permute.xlu0 %842
    %844 = vrot.lane.b32.xlu0 %v805, 15
    %v845 = vpop.permute.xlu0 %844
    %v846 = vsel %vm402, %v843, %v845
    %v847 = vsel %vm402, %v841, %v843
    %v848 = vsel %vm402, %v839, %v841
    %v849 = vsel %vm402, %v845, %v839
    %v850 = vmul.f32 %v849, %v413
    %v851 = vmul.f32 %v848, %v417
    %v852 = vmul.f32 %v847, %v421
    %v853 = vmul.f32 %v846, %v425
    %854 = vrot.lane.b32.xlu0 %v802, 1
    %v855 = vpop.permute.xlu0 %854
    %856 = vrot.lane.b32.xlu0 %v803, 1
    %v857 = vpop.permute.xlu0 %856
    %858 = vrot.lane.b32.xlu0 %v804, 1
    %v859 = vpop.permute.xlu0 %858
    %860 = vrot.lane.b32.xlu0 %v805, 1
    %v861 = vpop.permute.xlu0 %860
    %v862 = vsel %vm442, %v859, %v861
    %v863 = vsel %vm442, %v857, %v859
    %v864 = vsel %vm442, %v855, %v857
    %v865 = vsel %vm442, %v861, %v855
    %v866 = vmul.f32 %v865, %v453
    %v867 = vmul.f32 %v864, %v457
    %v868 = vmul.f32 %v863, %v461
    %v869 = vmul.f32 %v862, %v465
    %870 = vrot.lane.b32.xlu0 %v802, 127
    %v871 = vpop.permute.xlu0 %870
    %872 = vrot.lane.b32.xlu0 %v803, 127
    %v873 = vpop.permute.xlu0 %872
    %874 = vrot.lane.b32.xlu0 %v804, 127
    %v875 = vpop.permute.xlu0 %874
    %876 = vrot.lane.b32.xlu0 %v805, 127
    %v877 = vpop.permute.xlu0 %876
    %v878 = vsel %vm482, %v875, %v877
    %v879 = vsel %vm482, %v873, %v875
    %v880 = vsel %vm482, %v871, %v873
    %v881 = vsel %vm482, %v877, %v871
    %v882 = vmul.f32 %v880, %v493
    %v883 = vmul.f32 %v879, %v497
    %v884 = vmul.f32 %v878, %v501
    %v885 = vmul.f32 %v881, %v505
    %886 = vrot.lane.b32.xlu0 %v802, 113
    %v887 = vpop.permute.xlu0 %886
    %888 = vrot.lane.b32.xlu0 %v803, 113
    %v889 = vpop.permute.xlu0 %888
    %890 = vrot.lane.b32.xlu0 %v804, 113
    %v891 = vpop.permute.xlu0 %890
    %892 = vrot.lane.b32.xlu0 %v805, 113
    %v893 = vpop.permute.xlu0 %892
    %v894 = vsel %vm522, %v891, %v893
    %v895 = vsel %vm522, %v889, %v891
    %v896 = vsel %vm522, %v887, %v889
    %v897 = vsel %vm522, %v893, %v887
    %v898 = vmul.f32 %v896, %v533
    %v899 = vmul.f32 %v895, %v537
    %v900 = vmul.f32 %v894, %v541
    %v901 = vmul.f32 %v897, %v545
    %902 = vrot.lane.b32.xlu0 %v802, 112
    %v903 = vpop.permute.xlu0 %902
    %904 = vrot.lane.b32.xlu0 %v803, 112
    %v905 = vpop.permute.xlu0 %904
    %906 = vrot.lane.b32.xlu0 %v804, 112
    %v907 = vpop.permute.xlu0 %906
    %908 = vrot.lane.b32.xlu0 %v805, 112
    %v909 = vpop.permute.xlu0 %908
    %v910 = vsel %vm562, %v907, %v909
    %v911 = vsel %vm562, %v905, %v907
    %v912 = vsel %vm562, %v903, %v905
    %v913 = vsel %vm562, %v909, %v903
    %v914 = vmul.f32 %v912, %v573
    %v915 = vmul.f32 %v911, %v577
    %v916 = vmul.f32 %v910, %v581
    %v917 = vmul.f32 %v913, %v585
    %918 = vrot.lane.b32.xlu0 %v802, 111
    %v919 = vpop.permute.xlu0 %918
    %920 = vrot.lane.b32.xlu0 %v803, 111
    %v921 = vpop.permute.xlu0 %920
    %922 = vrot.lane.b32.xlu0 %v804, 111
    %v923 = vpop.permute.xlu0 %922
    %924 = vrot.lane.b32.xlu0 %v805, 111
    %v925 = vpop.permute.xlu0 %924
    %v926 = vsel %vm602, %v923, %v925
    %v927 = vsel %vm602, %v921, %v923
    %v928 = vsel %vm602, %v919, %v921
    %v929 = vsel %vm602, %v925, %v919
    %v930 = vmul.f32 %v928, %v613
    %v931 = vmul.f32 %v927, %v617
    %v932 = vmul.f32 %v926, %v621
    %v933 = vmul.f32 %v929, %v625
    %v934 = vld [vmem:[#allocation8] sm:$0xff]
    %936 = vset.pattern.permute.xlu0 0
    %937 = vperm.xlu0 %936, %v116
    %v938 = vpop.permute.xlu0 %937
    %v941 = vsel %vm640, %v934, 0
    %943 = vmatprep.subr.mxu0 %v819
    %944 = vmatpush1.msra.mxu0 %v818
    %945 = vmatprep.subr.mxu0 %v835
    %946 = vmatpush1.msra.mxu0 %v834
    %947 = vmatprep.subr.mxu0 %v851
    %948 = vmatpush1.msra.mxu0 %v850
    %949 = vmatprep.subr.mxu0 %v867
    %950 = vmatpush1.msra.mxu0 %v866
    %951 = vmatprep.subr.mxu0 %v803
    %952 = vmatpush1.msra.mxu0 %v802
    %953 = vmatprep.subr.mxu0 %v883
    %954 = vmatpush1.msra.mxu0 %v882
    %955 = vmatprep.subr.mxu0 %v899
    %956 = vmatpush1.msra.mxu0 %v898
    %957 = vmatprep.subr.mxu0 %v915
    %958 = vmatpush1.msra.mxu0 %v914
    %959 = vmatprep.subr.mxu0 %v931
    %960 = vmatpush1.msra.mxu0 %v930
    %961 = vmatprep.subr.mxu0 0.0
    %962 = vmatpush1.msra.mxu0 0.0
    %963 = vmatprep.subr.mxu0 0.0
    %964 = vmatpush1.msra.mxu0 0.0
    %965 = vmatprep.subr.mxu0 0.0
    %966 = vmatpush1.msra.mxu0 0.0
    %967 = vmatprep.subr.mxu0 0.0
    %968 = vmatpush1.msra.mxu0 0.0
    %969 = vmatprep.subr.mxu0 0.0
    %970 = vmatpush1.msra.mxu0 0.0
    %971 = vmatprep.subr.mxu0 0.0
    %972 = vmatpush1.msra.mxu0 0.0
    %973 = vmatprep.subr.mxu0 0.0
    %974 = vmatpush1.msra.mxu0 0.0
    %975 = vmatprep.subr.mxu0 0.0
    %976 = vmatpush1.msra.mxu0 0.0
    %977 = vmatprep.subr.mxu0 0.0
    %978 = vmatpush1.msra.mxu0 0.0
    %979 = vmatprep.subr.mxu0 0.0
    %980 = vmatpush1.msra.mxu0 0.0
    %981 = vmatprep.subr.mxu0 0.0
    %982 = vmatpush1.msra.mxu0 0.0
    %983 = vmatprep.subr.mxu0 0.0
    %984 = vmatpush1.msra.mxu0 0.0
    %985 = vmatprep.subr.mxu0 0.0
    %986 = vmatpush1.msra.mxu0 0.0
    %987 = vmatprep.subr.mxu0 0.0
    %988 = vmatpush1.msra.mxu0 0.0
    %989 = vmatprep.subr.mxu0 0.0
    %990 = vmatpush1.msra.mxu0 0.0
    %991 = vmatprep.subr.mxu0 0.0
    %992 = vmatpush1.msra.mxu0 0.0
    %993 = vmatprep.subr.mxu0 0.0
    %994 = vmatpush1.msra.mxu0 0.0
    %995 = vmatprep.subr.mxu0 0.0
    %996 = vmatpush1.msra.mxu0 0.0
    %997 = vmatprep.subr.mxu0 0.0
    %998 = vmatpush1.msra.mxu0 0.0
    %999 = vmatprep.subr.mxu0 0.0
    %1000 = vmatpush1.msra.mxu0 0.0
    %1001 = vmatprep.subr.mxu0 0.0
    %1002 = vmatpush1.msra.mxu0 0.0
    %1003 = vmatprep.subr.mxu0 0.0
    %1004 = vmatpush1.msra.mxu0 0.0
    %1005 = vmatprep.subr.mxu0 0.0
    %1006 = vmatpush1.msra.mxu0 0.0
    %1007 = vmatprep.mubr.f32.mxu0 0.0
    %1008 = vmatmul.mubr.f32.gmra.mrb[0].mxu0 %v941
    %v1009 = vpop.f32.mrb[0].mxu0
    %v1010 = vadd.f32 %v938, %v1009
    %v1011 = vpop.f32.mrb[0].mxu0
    %v1012 = vadd.f32 %v938, %v1011
    %1013 = vdwg.mxu0
    %1014 = vmatprep.subr.mxu0 %v821
    %1015 = vmatpush1.msra.mxu0 %v820
    %1016 = vmatprep.subr.mxu0 %v837
    %1017 = vmatpush1.msra.mxu0 %v836
    %1018 = vmatprep.subr.mxu0 %v853
    %1019 = vmatpush1.msra.mxu0 %v852
    %1020 = vmatprep.subr.mxu0 %v869
    %1021 = vmatpush1.msra.mxu0 %v868
    %1022 = vmatprep.subr.mxu0 %v805
    %1023 = vmatpush1.msra.mxu0 %v804
    %1024 = vmatprep.subr.mxu0 %v885
    %1025 = vmatpush1.msra.mxu0 %v884
    %1026 = vmatprep.subr.mxu0 %v901
    %1027 = vmatpush1.msra.mxu0 %v900
    %1028 = vmatprep.subr.mxu0 %v917
    %1029 = vmatpush1.msra.mxu0 %v916
    %1030 = vmatprep.subr.mxu0 %v933
    %1031 = vmatpush1.msra.mxu0 %v932
    %1032 = vmatprep.subr.mxu0 0.0
    %1033 = vmatpush1.msra.mxu0 0.0
    %1034 = vmatprep.subr.mxu0 0.0
    %1035 = vmatpush1.msra.mxu0 0.0
    %1036 = vmatprep.subr.mxu0 0.0
    %1037 = vmatpush1.msra.mxu0 0.0
    %1038 = vmatprep.subr.mxu0 0.0
    %1039 = vmatpush1.msra.mxu0 0.0
    %1040 = vmatprep.subr.mxu0 0.0
    %1041 = vmatpush1.msra.mxu0 0.0
    %1042 = vmatprep.subr.mxu0 0.0
    %1043 = vmatpush1.msra.mxu0 0.0
    %1044 = vmatprep.subr.mxu0 0.0
    %1045 = vmatpush1.msra.mxu0 0.0
    %1046 = vmatprep.subr.mxu0 0.0
    %1047 = vmatpush1.msra.mxu0 0.0
    %1048 = vmatprep.subr.mxu0 0.0
    %1049 = vmatpush1.msra.mxu0 0.0
    %1050 = vmatprep.subr.mxu0 0.0
    %1051 = vmatpush1.msra.mxu0 0.0
    %1052 = vmatprep.subr.mxu0 0.0
    %1053 = vmatpush1.msra.mxu0 0.0
    %1054 = vmatprep.subr.mxu0 0.0
    %1055 = vmatpush1.msra.mxu0 0.0
    %1056 = vmatprep.subr.mxu0 0.0
    %1057 = vmatpush1.msra.mxu0 0.0
    %1058 = vmatprep.subr.mxu0 0.0
    %1059 = vmatpush1.msra.mxu0 0.0
    %1060 = vmatprep.subr.mxu0 0.0
    %1061 = vmatpush1.msra.mxu0 0.0
    %1062 = vmatprep.subr.mxu0 0.0
    %1063 = vmatpush1.msra.mxu0 0.0
    %1064 = vmatprep.subr.mxu0 0.0
    %1065 = vmatpush1.msra.mxu0 0.0
    %1066 = vmatprep.subr.mxu0 0.0
    %1067 = vmatpush1.msra.mxu0 0.0
    %1068 = vmatprep.subr.mxu0 0.0
    %1069 = vmatpush1.msra.mxu0 0.0
    %1070 = vmatprep.subr.mxu0 0.0
    %1071 = vmatpush1.msra.mxu0 0.0
    %1072 = vmatprep.subr.mxu0 0.0
    %1073 = vmatpush1.msra.mxu0 0.0
    %1074 = vmatprep.subr.mxu0 0.0
    %1075 = vmatpush1.msra.mxu0 0.0
    %1076 = vmatprep.subr.mxu0 0.0
    %1077 = vmatpush1.msra.mxu0 0.0
    %1078 = vmatprep.mubr.f32.mxu0 0.0
    %1079 = vmatmul.mubr.f32.gmra.mrb[0].mxu0 %v941
    %v1080 = vpop.f32.mrb[0].mxu0
    %v1081 = vadd.f32 %v938, %v1080
    %v1082 = vpop.f32.mrb[0].mxu0
    %v1083 = vadd.f32 %v938, %v1082
    %1084 = vdwg.mxu0
    %v1085 = vmul.f32 %v1010, 0.5
    %v1086 = vmul.f32 %v1012, 0.5
    %v1087 = vmul.f32 %v1081, 0.5
    %v1088 = vmul.f32 %v1083, 0.5
    %v1089 = vmul.f32 %v1010, 0.70710677
    %v1090 = vmul.f32 %v1012, 0.70710677
    %v1091 = vmul.f32 %v1081, 0.70710677
    %v1092 = vmul.f32 %v1083, 0.70710677
    %v1093 = verf.f32.pop %v1089
    %v1094 = verf.f32.pop %v1090
    %v1095 = verf.f32.pop %v1091
    %v1096 = verf.f32.pop %v1092
    %v1097 = vadd.f32 %v1093, 1.0
    %v1098 = vadd.f32 %v1094, 1.0
    %v1099 = vadd.f32 %v1095, 1.0
    %v1100 = vadd.f32 %v1096, 1.0
    %v1101 = vmul.f32 %v1085, %v1097
    %v1102 = vmul.f32 %v1086, %v1098
    %v1103 = vmul.f32 %v1087, %v1099
    %v1104 = vmul.f32 %v1088, %v1100
    %v1105 = vld [vmem:[#allocation10] sm:$0xf]
    %1107 = vset.pattern.permute.xlu0 0
    %1108 = vperm.xlu0 %1107, %v117
    %v1109 = vpop.permute.xlu0 %1108
    %vm1111 = vcmask 64512
    %v1113 = vsel %vm1111, %v1105, 0
    %1115 = vmatprep.subr.mxu0 %v1102
    %1116 = vmatpush1.msra.mxu0 %v1101
    %1117 = vmatprep.subr.mxu0 0.0
    %1118 = vmatpush1.msra.mxu0 0.0
    %1119 = vmatprep.subr.mxu0 0.0
    %1120 = vmatpush1.msra.mxu0 0.0
    %1121 = vmatprep.subr.mxu0 0.0
    %1122 = vmatpush1.msra.mxu0 0.0
    %1123 = vmatprep.subr.mxu0 0.0
    %1124 = vmatpush1.msra.mxu0 0.0
    %1125 = vmatprep.subr.mxu0 0.0
    %1126 = vmatpush1.msra.mxu0 0.0
    %1127 = vmatprep.subr.mxu0 0.0
    %1128 = vmatpush1.msra.mxu0 0.0
    %1129 = vmatprep.subr.mxu0 0.0
    %1130 = vmatpush1.msra.mxu0 0.0
    %1131 = vmatprep.subr.mxu0 0.0
    %1132 = vmatpush1.msra.mxu0 0.0
    %1133 = vmatprep.subr.mxu0 0.0
    %1134 = vmatpush1.msra.mxu0 0.0
    %1135 = vmatprep.subr.mxu0 0.0
    %1136 = vmatpush1.msra.mxu0 0.0
    %1137 = vmatprep.subr.mxu0 0.0
    %1138 = vmatpush1.msra.mxu0 0.0
    %1139 = vmatprep.subr.mxu0 0.0
    %1140 = vmatpush1.msra.mxu0 0.0
    %1141 = vmatprep.subr.mxu0 0.0
    %1142 = vmatpush1.msra.mxu0 0.0
    %1143 = vmatprep.subr.mxu0 0.0
    %1144 = vmatpush1.msra.mxu0 0.0
    %1145 = vmatprep.subr.mxu0 0.0
    %1146 = vmatpush1.msra.mxu0 0.0
    %1147 = vmatprep.subr.mxu0 0.0
    %1148 = vmatpush1.msra.mxu0 0.0
    %1149 = vmatprep.subr.mxu0 0.0
    %1150 = vmatpush1.msra.mxu0 0.0
    %1151 = vmatprep.subr.mxu0 0.0
    %1152 = vmatpush1.msra.mxu0 0.0
    %1153 = vmatprep.subr.mxu0 0.0
    %1154 = vmatpush1.msra.mxu0 0.0
    %1155 = vmatprep.subr.mxu0 0.0
    %1156 = vmatpush1.msra.mxu0 0.0
    %1157 = vmatprep.subr.mxu0 0.0
    %1158 = vmatpush1.msra.mxu0 0.0
    %1159 = vmatprep.subr.mxu0 0.0
    %1160 = vmatpush1.msra.mxu0 0.0
    %1161 = vmatprep.subr.mxu0 0.0
    %1162 = vmatpush1.msra.mxu0 0.0
    %1163 = vmatprep.subr.mxu0 0.0
    %1164 = vmatpush1.msra.mxu0 0.0
    %1165 = vmatprep.subr.mxu0 0.0
    %1166 = vmatpush1.msra.mxu0 0.0
    %1167 = vmatprep.subr.mxu0 0.0
    %1168 = vmatpush1.msra.mxu0 0.0
    %1169 = vmatprep.subr.mxu0 0.0
    %1170 = vmatpush1.msra.mxu0 0.0
    %1171 = vmatprep.subr.mxu0 0.0
    %1172 = vmatpush1.msra.mxu0 0.0
    %1173 = vmatprep.subr.mxu0 0.0
    %1174 = vmatpush1.msra.mxu0 0.0
    %1175 = vmatprep.subr.mxu0 0.0
    %1176 = vmatpush1.msra.mxu0 0.0
    %1177 = vmatprep.subr.mxu0 0.0
    %1178 = vmatpush1.msra.mxu0 0.0
    %1179 = vmatprep.mubr.f32.mxu0 0.0
    %1180 = vmatmul.mubr.f32.gmra.mrb[0].mxu0 %v1113
    %v1181 = vpop.f32.mrb[0].mxu0
    %v1182 = vadd.f32 %v1109, %v1181
    %v1183 = vpop.f32.mrb[0].mxu0
    %v1184 = vadd.f32 %v1109, %v1183
    %1185 = vdwg.mxu0
    %1186 = vmatprep.subr.mxu0 %v1104
    %1187 = vmatpush1.msra.mxu0 %v1103
    %1188 = vmatprep.subr.mxu0 0.0
    %1189 = vmatpush1.msra.mxu0 0.0
    %1190 = vmatprep.subr.mxu0 0.0
    %1191 = vmatpush1.msra.mxu0 0.0
    %1192 = vmatprep.subr.mxu0 0.0
    %1193 = vmatpush1.msra.mxu0 0.0
    %1194 = vmatprep.subr.mxu0 0.0
    %1195 = vmatpush1.msra.mxu0 0.0
    %1196 = vmatprep.subr.mxu0 0.0
    %1197 = vmatpush1.msra.mxu0 0.0
    %1198 = vmatprep.subr.mxu0 0.0
    %1199 = vmatpush1.msra.mxu0 0.0
    %1200 = vmatprep.subr.mxu0 0.0
    %1201 = vmatpush1.msra.mxu0 0.0
    %1202 = vmatprep.subr.mxu0 0.0
    %1203 = vmatpush1.msra.mxu0 0.0
    %1204 = vmatprep.subr.mxu0 0.0
    %1205 = vmatpush1.msra.mxu0 0.0
    %1206 = vmatprep.subr.mxu0 0.0
    %1207 = vmatpush1.msra.mxu0 0.0
    %1208 = vmatprep.subr.mxu0 0.0
    %1209 = vmatpush1.msra.mxu0 0.0
    %1210 = vmatprep.subr.mxu0 0.0
    %1211 = vmatpush1.msra.mxu0 0.0
    %1212 = vmatprep.subr.mxu0 0.0
    %1213 = vmatpush1.msra.mxu0 0.0
    %1214 = vmatprep.subr.mxu0 0.0
    %1215 = vmatpush1.msra.mxu0 0.0
    %1216 = vmatprep.subr.mxu0 0.0
    %1217 = vmatpush1.msra.mxu0 0.0
    %1218 = vmatprep.subr.mxu0 0.0
    %1219 = vmatpush1.msra.mxu0 0.0
    %1220 = vmatprep.subr.mxu0 0.0
    %1221 = vmatpush1.msra.mxu0 0.0
    %1222 = vmatprep.subr.mxu0 0.0
    %1223 = vmatpush1.msra.mxu0 0.0
    %1224 = vmatprep.subr.mxu0 0.0
    %1225 = vmatpush1.msra.mxu0 0.0
    %1226 = vmatprep.subr.mxu0 0.0
    %1227 = vmatpush1.msra.mxu0 0.0
    %1228 = vmatprep.subr.mxu0 0.0
    %1229 = vmatpush1.msra.mxu0 0.0
    %1230 = vmatprep.subr.mxu0 0.0
    %1231 = vmatpush1.msra.mxu0 0.0
    %1232 = vmatprep.subr.mxu0 0.0
    %1233 = vmatpush1.msra.mxu0 0.0
    %1234 = vmatprep.subr.mxu0 0.0
    %1235 = vmatpush1.msra.mxu0 0.0
    %1236 = vmatprep.subr.mxu0 0.0
    %1237 = vmatpush1.msra.mxu0 0.0
    %1238 = vmatprep.subr.mxu0 0.0
    %1239 = vmatpush1.msra.mxu0 0.0
    %1240 = vmatprep.subr.mxu0 0.0
    %1241 = vmatpush1.msra.mxu0 0.0
    %1242 = vmatprep.subr.mxu0 0.0
    %1243 = vmatpush1.msra.mxu0 0.0
    %1244 = vmatprep.subr.mxu0 0.0
    %1245 = vmatpush1.msra.mxu0 0.0
    %1246 = vmatprep.subr.mxu0 0.0
    %1247 = vmatpush1.msra.mxu0 0.0
    %1248 = vmatprep.subr.mxu0 0.0
    %1249 = vmatpush1.msra.mxu0 0.0
    %1250 = vmatprep.mubr.f32.mxu0 0.0
    %1251 = vmatmul.mubr.f32.gmra.mrb[0].mxu0 %v1113
    %v1252 = vpop.f32.mrb[0].mxu0
    %v1253 = vadd.f32 %v1109, %v1252
    %v1254 = vpop.f32.mrb[0].mxu0
    %v1255 = vadd.f32 %v1109, %v1254
    %1256 = vdwg.mxu0
    %v1259 = vcombine.high %v112, %v112
    %v1260 = vcombine.high %v113, %v113
    %v1263 = vadd.f32 %v1182, %v112
    %v1264 = vadd.f32 %v1184, %v1259
    %v1265 = vadd.f32 %v1253, %v113
    %v1266 = vadd.f32 %v1255, %v1260
    %v1271 = vcombine.low %v1263, %v1264
    %v1272 = vcombine.low %v1265, %v1266
    %1275 = vst [vmem:[#allocation14] sm:$0xff] %v1271
    %1276 = vst [vmem:[#allocation14 + $0x8] sm:$0xff] %v1272
    // Predicated region
    $region58: #{tpu_custom_call.1} parent=1 // pred_check
      _
    $region59: #{tpu_custom_call.1} parent=1 // pred_check_branch
      %1278 = sbr.rel (0) target = $region61
    $region60: #{tpu_custom_call.1} parent=1 // pred_region
      %s1280 = ssub.s32 256, 256
      %1281 = vsyncadd [#allocation4], %s1280
      %s1283 = sshll.u32 [#allocation14], 4
      %s1284 = int_to_ptr.vmem [resolvable:$true] %s1283
      %1286 = dma.vmem_to_hbm [thread:$0]  %s1284, 256, %s7, [#allocation4]
    $region61: #{tpu_custom_call.1} parent=1 // pred_fallthru
      _
    // Predicated region
    $region62: #{tpu_custom_call.1} parent=1 // pred_check
      _
    $region63: #{tpu_custom_call.1} parent=1 // pred_check_branch
      %1288 = sbr.rel (0) target = $region65
    $region64: #{tpu_custom_call.1} parent=1 // pred_region
      %1289 = dma.done [#allocation4], 256
    $region65: #{tpu_custom_call.1} parent=1 // pred_fallthru
      _
    %1290 = vsyncpa [#allocation3], 1
    %1291 = vsyncpa [#allocation6], 1
    %1292 = vsyncpa [#allocation9], 1
    %1293 = vsyncpa [#allocation12], 1
    %1294 = vsyncpa [#allocation4], 1

</llo_original>
